<compile_context>
chip_gen: v7x
topology: tpu7x:2x2x1
jax: 0.10.0
libtpu: 0.0.40
codegen_flags: <defaults>
</compile_context>

<pallas_src>
import functools

import jax
import jax.numpy as jnp
import numpy as np
from jax.experimental import pallas as pl
from jax.experimental.pallas import tpu as pltpu


def _dwsep_conv_kernel(x_ref, wd_ref, bd_ref, wp_ref, bp_ref, o_ref, *,
                       ksize, w_pad, q):
    """Fused depthwise (VPU) + pointwise 1x1 (MXU) conv for one image.

    x_ref:  (H_pad*W_pad, C_in)  flattened padded NHWC image       VMEM
    wd_ref: (K*K, C_in)          depthwise weights, tap-major      VMEM
    bd_ref: (1, C_in)            depthwise bias                    VMEM
    wp_ref: (C_in, C_out)        pointwise weights                 VMEM
    bp_ref: (1, C_out)           pointwise bias                    VMEM
    o_ref:  (Q, C_out)           flattened stride-1 output (+halo) VMEM
    """
    c_in = x_ref.shape[-1]

    # ---- depthwise conv: K*K taps, each a contiguous slice of the flattened
    # image scaled by a per-channel (lane) weight vector.  Pure VPU work.
    acc = jnp.zeros((q, c_in), jnp.float32)
    for kh in range(ksize):
        for kw in range(ksize):
            win = x_ref[pl.ds(kh * w_pad + kw, q), :].astype(jnp.float32)
            acc = acc + win * wd_ref[kh * ksize + kw].astype(jnp.float32)
    acc = acc + bd_ref[0].astype(jnp.float32)

    # ---- pointwise 1x1 conv: ONE MXU matmul over all spatial positions.
    y = jnp.dot(acc, wp_ref[...].astype(jnp.float32),
                preferred_element_type=jnp.float32)
    y = y + bp_ref[0].astype(jnp.float32)
    o_ref[...] = y.astype(o_ref.dtype)


def prepare_params(dw_weight, dw_bias, pw_weight, pw_bias):
    """Convert torch-layout conv params to kernel layout (call ONCE, not per step)."""
    c_in, _, k, _ = dw_weight.shape            # (C_in, 1, K, K)
    c_out = pw_weight.shape[0]                 # (C_out, C_in, 1, 1)
    wd = jnp.transpose(dw_weight.reshape(c_in, k * k), (1, 0))   # (K*K, C_in)
    bd = dw_bias.reshape(1, c_in)
    wp = jnp.transpose(pw_weight.reshape(c_out, c_in), (1, 0))   # (C_in, C_out)
    bp = pw_bias.reshape(1, c_out)
    return dict(wd=wd, bd=bd, wp=wp, bp=bp, ksize=k)


def depthwise_separable_conv(x, params, *, stride=1, padding=0):
    """x: (N, C_in, H, W) float32 -> (N, C_out, H_out, W_out) float32."""
    wd, bd, wp, bp = params["wd"], params["bd"], params["wp"], params["bp"]
    k = params["ksize"]
    n, c_in, h, w = x.shape
    c_out = wp.shape[1]

    hp, wpad = h + 2 * padding, w + 2 * padding
    hc, wc = hp - k + 1, wpad - k + 1            # stride-1 conv output size
    assert hc >= 1 and wc >= 1, "kernel larger than padded input"
    q = (hc - 1) * wpad + wc                     # flattened output length (+halo)

    # Layout glue (outside the kernel): NCHW -> padded NHWC -> flatten spatial.
    x_nhwc = jnp.transpose(x, (0, 2, 3, 1))
    x_pad = jnp.pad(x_nhwc,
                    ((0, 0), (padding, padding), (padding, padding), (0, 0)))
    x_flat = x_pad.reshape(n, hp * wpad, c_in)

    kernel = functools.partial(_dwsep_conv_kernel, ksize=k, w_pad=wpad, q=q)
    out_flat = pl.pallas_call(
        kernel,
        grid=(n,),
        out_shape=jax.ShapeDtypeStruct((n, q, c_out), jnp.float32),
        in_specs=[
            pl.BlockSpec((None, hp * wpad, c_in), lambda i: (i, 0, 0)),  # x (per image)
            pl.BlockSpec((k * k, c_in), lambda i: (0, 0)),               # dw weights
            pl.BlockSpec((1, c_in), lambda i: (0, 0)),                   # dw bias
            pl.BlockSpec((c_in, c_out), lambda i: (0, 0)),               # pw weights
            pl.BlockSpec((1, c_out), lambda i: (0, 0)),                  # pw bias
        ],
        out_specs=pl.BlockSpec((None, q, c_out), lambda i: (i, 0, 0)),
        compiler_params=pltpu.CompilerParams(
            dimension_semantics=("parallel",)),
    )(x_flat, wd, bd, wp, bp)

    # Un-flatten: pad the (K-1)-wide halo tail, reshape to rows, drop halo
    # columns, apply the stride, and go back to NCHW.
    out_full = jnp.pad(out_flat, ((0, 0), (0, hc * wpad - q), (0, 0)))
    out = out_full.reshape(n, hc, wpad, c_out)[:, :, :wc, :]
    if stride > 1:
        # TODO(synk): for large strides this discards (1 - 1/stride^2) of the
        # computed positions; a strided in-kernel gather would avoid the waste.
        out = out[:, ::stride, ::stride, :]
    return jnp.transpose(out, (0, 3, 1, 2))


def depthwise_separable_conv_reference(x, dw_weight, dw_bias, pw_weight, pw_bias,
                                       *, stride=1, padding=0):
    """Pure-JAX reference of the torch forward (for correctness checking)."""
    dw = jax.lax.conv_general_dilated(
        x, dw_weight, window_strides=(stride, stride),
        padding=((padding, padding), (padding, padding)),
        dimension_numbers=("NCHW", "OIHW", "NCHW"),
        feature_group_count=x.shape[1])
    dw = dw + dw_bias[None, :, None, None]
    pw = jax.lax.conv_general_dilated(
        dw, pw_weight, window_strides=(1, 1), padding="VALID",
        dimension_numbers=("NCHW", "OIHW", "NCHW"))
    return pw + pw_bias[None, :, None, None]


if __name__ == "__main__":
    key = jax.random.PRNGKey(0)
    n, c_in, h, w = 2, 4, 16, 16
    c_out, k = 8, 3

    kx, k1, k2, k3, k4 = jax.random.split(key, 5)
    x = jax.random.normal(kx, (n, c_in, h, w), dtype=jnp.float32)
    dw_weight = jax.random.normal(k1, (c_in, 1, k, k), jnp.float32) / np.sqrt(k * k)
    dw_bias = 0.1 * jax.random.normal(k2, (c_in,), jnp.float32)
    pw_weight = jax.random.normal(k3, (c_out, c_in, 1, 1), jnp.float32) / np.sqrt(c_in)
    pw_bias = 0.1 * jax.random.normal(k4, (c_out,), jnp.float32)

    params = prepare_params(dw_weight, dw_bias, pw_weight, pw_bias)

    for stride, padding in ((1, 1), (2, 1)):
        out = jax.block_until_ready(
            depthwise_separable_conv(x, params, stride=stride, padding=padding))
        ref = jax.block_until_ready(
            depthwise_separable_conv_reference(
                x, dw_weight, dw_bias, pw_weight, pw_bias,
                stride=stride, padding=padding))
        assert out.shape == ref.shape, (out.shape, ref.shape)
        np.testing.assert_allclose(np.asarray(out), np.asarray(ref),
                                   rtol=1e-4, atol=1e-4)

    print("KERNEL_OK")
</pallas_src>

<mosaic_0001>
module attributes {stable_mosaic.version = 11 : i64} {
  func.func @_dwsep_conv_kernel(%arg0: i32, %arg1: memref<1x324x4xf32, #tpu.memory_space<vmem>>, %arg2: memref<9x4xf32, #tpu.memory_space<vmem>>, %arg3: memref<1x4xf32, #tpu.memory_space<vmem>>, %arg4: memref<4x8xf32, #tpu.memory_space<vmem>>, %arg5: memref<1x8xf32, #tpu.memory_space<vmem>>, %arg6: memref<1x286x8xf32, #tpu.memory_space<vmem>>) attributes {dimension_semantics = [#tpu.dimension_semantics<parallel>], iteration_bounds = array<i64: 2>, scalar_prefetch = 0 : i64, scratch_operands = 0 : i64, tpu.core_type = #tpu.core_type<tc>, window_params = [{transform_indices = @transform_0, window_bounds = array<i64: 1, 324, 4>}, {pipeline_mode = #tpu.pipeline_mode<synchronous>, transform_indices = @transform_1, window_bounds = array<i64: 9, 4>}, {pipeline_mode = #tpu.pipeline_mode<synchronous>, transform_indices = @transform_2, window_bounds = array<i64: 1, 4>}, {pipeline_mode = #tpu.pipeline_mode<synchronous>, transform_indices = @transform_3, window_bounds = array<i64: 4, 8>}, {pipeline_mode = #tpu.pipeline_mode<synchronous>, transform_indices = @transform_4, window_bounds = array<i64: 1, 8>}, {transform_indices = @transform_5, window_bounds = array<i64: 1, 286, 8>}]} {
    %cst = arith.constant 0.000000e+00 : f32
    %0 = vector.broadcast %cst : f32 to vector<286x4xf32>
    %c0 = arith.constant 0 : index
    %c0_0 = arith.constant 0 : index
    %c0_1 = arith.constant 0 : index
    %1 = vector.load %arg1[%c0, %c0_0, %c0_1] : memref<1x324x4xf32, #tpu.memory_space<vmem>>, vector<1x286x4xf32>
    %2 = vector.shape_cast %1 : vector<1x286x4xf32> to vector<286x4xf32>
    %c0_2 = arith.constant 0 : index
    %c0_3 = arith.constant 0 : index
    %3 = vector.load %arg2[%c0_2, %c0_3] : memref<9x4xf32, #tpu.memory_space<vmem>>, vector<1x4xf32>
    %4 = vector.shape_cast %3 : vector<1x4xf32> to vector<4xf32>
    %5 = vector.shape_cast %4 : vector<4xf32> to vector<1x4xf32>
    %6 = vector.broadcast %5 : vector<1x4xf32> to vector<286x4xf32>
    %7 = arith.mulf %2, %6 : vector<286x4xf32>
    %8 = arith.addf %0, %7 : vector<286x4xf32>
    %c0_4 = arith.constant 0 : index
    %c1 = arith.constant 1 : index
    %c0_5 = arith.constant 0 : index
    %9 = vector.load %arg1[%c0_4, %c1, %c0_5] : memref<1x324x4xf32, #tpu.memory_space<vmem>>, vector<1x286x4xf32>
    %10 = vector.shape_cast %9 : vector<1x286x4xf32> to vector<286x4xf32>
    %c1_6 = arith.constant 1 : index
    %c0_7 = arith.constant 0 : index
    %11 = vector.load %arg2[%c1_6, %c0_7] : memref<9x4xf32, #tpu.memory_space<vmem>>, vector<1x4xf32>
    %12 = vector.shape_cast %11 : vector<1x4xf32> to vector<4xf32>
    %13 = vector.shape_cast %12 : vector<4xf32> to vector<1x4xf32>
    %14 = vector.broadcast %13 : vector<1x4xf32> to vector<286x4xf32>
    %15 = arith.mulf %10, %14 : vector<286x4xf32>
    %16 = arith.addf %8, %15 : vector<286x4xf32>
    %c0_8 = arith.constant 0 : index
    %c2 = arith.constant 2 : index
    %c0_9 = arith.constant 0 : index
    %17 = vector.load %arg1[%c0_8, %c2, %c0_9] : memref<1x324x4xf32, #tpu.memory_space<vmem>>, vector<1x286x4xf32>
    %18 = vector.shape_cast %17 : vector<1x286x4xf32> to vector<286x4xf32>
    %c2_10 = arith.constant 2 : index
    %c0_11 = arith.constant 0 : index
    %19 = vector.load %arg2[%c2_10, %c0_11] : memref<9x4xf32, #tpu.memory_space<vmem>>, vector<1x4xf32>
    %20 = vector.shape_cast %19 : vector<1x4xf32> to vector<4xf32>
    %21 = vector.shape_cast %20 : vector<4xf32> to vector<1x4xf32>
    %22 = vector.broadcast %21 : vector<1x4xf32> to vector<286x4xf32>
    %23 = arith.mulf %18, %22 : vector<286x4xf32>
    %24 = arith.addf %16, %23 : vector<286x4xf32>
    %c0_12 = arith.constant 0 : index
    %c18 = arith.constant 18 : index
    %c0_13 = arith.constant 0 : index
    %25 = vector.load %arg1[%c0_12, %c18, %c0_13] : memref<1x324x4xf32, #tpu.memory_space<vmem>>, vector<1x286x4xf32>
    %26 = vector.shape_cast %25 : vector<1x286x4xf32> to vector<286x4xf32>
    %c3 = arith.constant 3 : index
    %c0_14 = arith.constant 0 : index
    %27 = vector.load %arg2[%c3, %c0_14] : memref<9x4xf32, #tpu.memory_space<vmem>>, vector<1x4xf32>
    %28 = vector.shape_cast %27 : vector<1x4xf32> to vector<4xf32>
    %29 = vector.shape_cast %28 : vector<4xf32> to vector<1x4xf32>
    %30 = vector.broadcast %29 : vector<1x4xf32> to vector<286x4xf32>
    %31 = arith.mulf %26, %30 : vector<286x4xf32>
    %32 = arith.addf %24, %31 : vector<286x4xf32>
    %c0_15 = arith.constant 0 : index
    %c19 = arith.constant 19 : index
    %c0_16 = arith.constant 0 : index
    %33 = vector.load %arg1[%c0_15, %c19, %c0_16] : memref<1x324x4xf32, #tpu.memory_space<vmem>>, vector<1x286x4xf32>
    %34 = vector.shape_cast %33 : vector<1x286x4xf32> to vector<286x4xf32>
    %c4 = arith.constant 4 : index
    %c0_17 = arith.constant 0 : index
    %35 = vector.load %arg2[%c4, %c0_17] : memref<9x4xf32, #tpu.memory_space<vmem>>, vector<1x4xf32>
    %36 = vector.shape_cast %35 : vector<1x4xf32> to vector<4xf32>
    %37 = vector.shape_cast %36 : vector<4xf32> to vector<1x4xf32>
    %38 = vector.broadcast %37 : vector<1x4xf32> to vector<286x4xf32>
    %39 = arith.mulf %34, %38 : vector<286x4xf32>
    %40 = arith.addf %32, %39 : vector<286x4xf32>
    %c0_18 = arith.constant 0 : index
    %c20 = arith.constant 20 : index
    %c0_19 = arith.constant 0 : index
    %41 = vector.load %arg1[%c0_18, %c20, %c0_19] : memref<1x324x4xf32, #tpu.memory_space<vmem>>, vector<1x286x4xf32>
    %42 = vector.shape_cast %41 : vector<1x286x4xf32> to vector<286x4xf32>
    %c5 = arith.constant 5 : index
    %c0_20 = arith.constant 0 : index
    %43 = vector.load %arg2[%c5, %c0_20] : memref<9x4xf32, #tpu.memory_space<vmem>>, vector<1x4xf32>
    %44 = vector.shape_cast %43 : vector<1x4xf32> to vector<4xf32>
    %45 = vector.shape_cast %44 : vector<4xf32> to vector<1x4xf32>
    %46 = vector.broadcast %45 : vector<1x4xf32> to vector<286x4xf32>
    %47 = arith.mulf %42, %46 : vector<286x4xf32>
    %48 = arith.addf %40, %47 : vector<286x4xf32>
    %c0_21 = arith.constant 0 : index
    %c36 = arith.constant 36 : index
    %c0_22 = arith.constant 0 : index
    %49 = vector.load %arg1[%c0_21, %c36, %c0_22] : memref<1x324x4xf32, #tpu.memory_space<vmem>>, vector<1x286x4xf32>
    %50 = vector.shape_cast %49 : vector<1x286x4xf32> to vector<286x4xf32>
    %c6 = arith.constant 6 : index
    %c0_23 = arith.constant 0 : index
    %51 = vector.load %arg2[%c6, %c0_23] : memref<9x4xf32, #tpu.memory_space<vmem>>, vector<1x4xf32>
    %52 = vector.shape_cast %51 : vector<1x4xf32> to vector<4xf32>
    %53 = vector.shape_cast %52 : vector<4xf32> to vector<1x4xf32>
    %54 = vector.broadcast %53 : vector<1x4xf32> to vector<286x4xf32>
    %55 = arith.mulf %50, %54 : vector<286x4xf32>
    %56 = arith.addf %48, %55 : vector<286x4xf32>
    %c0_24 = arith.constant 0 : index
    %c37 = arith.constant 37 : index
    %c0_25 = arith.constant 0 : index
    %57 = vector.load %arg1[%c0_24, %c37, %c0_25] : memref<1x324x4xf32, #tpu.memory_space<vmem>>, vector<1x286x4xf32>
    %58 = vector.shape_cast %57 : vector<1x286x4xf32> to vector<286x4xf32>
    %c7 = arith.constant 7 : index
    %c0_26 = arith.constant 0 : index
    %59 = vector.load %arg2[%c7, %c0_26] : memref<9x4xf32, #tpu.memory_space<vmem>>, vector<1x4xf32>
    %60 = vector.shape_cast %59 : vector<1x4xf32> to vector<4xf32>
    %61 = vector.shape_cast %60 : vector<4xf32> to vector<1x4xf32>
    %62 = vector.broadcast %61 : vector<1x4xf32> to vector<286x4xf32>
    %63 = arith.mulf %58, %62 : vector<286x4xf32>
    %64 = arith.addf %56, %63 : vector<286x4xf32>
    %c0_27 = arith.constant 0 : index
    %c38 = arith.constant 38 : index
    %c0_28 = arith.constant 0 : index
    %65 = vector.load %arg1[%c0_27, %c38, %c0_28] : memref<1x324x4xf32, #tpu.memory_space<vmem>>, vector<1x286x4xf32>
    %66 = vector.shape_cast %65 : vector<1x286x4xf32> to vector<286x4xf32>
    %c8 = arith.constant 8 : index
    %c0_29 = arith.constant 0 : index
    %67 = vector.load %arg2[%c8, %c0_29] : memref<9x4xf32, #tpu.memory_space<vmem>>, vector<1x4xf32>
    %68 = vector.shape_cast %67 : vector<1x4xf32> to vector<4xf32>
    %69 = vector.shape_cast %68 : vector<4xf32> to vector<1x4xf32>
    %70 = vector.broadcast %69 : vector<1x4xf32> to vector<286x4xf32>
    %71 = arith.mulf %66, %70 : vector<286x4xf32>
    %72 = arith.addf %64, %71 : vector<286x4xf32>
    %c0_30 = arith.constant 0 : index
    %c0_31 = arith.constant 0 : index
    %73 = vector.load %arg3[%c0_30, %c0_31] : memref<1x4xf32, #tpu.memory_space<vmem>>, vector<1x4xf32>
    %74 = vector.shape_cast %73 : vector<1x4xf32> to vector<4xf32>
    %75 = vector.shape_cast %74 : vector<4xf32> to vector<1x4xf32>
    %76 = vector.broadcast %75 : vector<1x4xf32> to vector<286x4xf32>
    %77 = arith.addf %72, %76 : vector<286x4xf32>
    %c0_32 = arith.constant 0 : index
    %c0_33 = arith.constant 0 : index
    %78 = vector.load %arg4[%c0_32, %c0_33] : memref<4x8xf32, #tpu.memory_space<vmem>>, vector<4x8xf32>
    %cst_34 = arith.constant dense<0.000000e+00> : vector<286x8xf32>
    %79 = tpu.matmul %77, %78, %cst_34 {dimension_numbers = #tpu.dot_dimension_numbers<[1], [0], [0], [1], [0, 0, 1, 1], [], []>} : vector<286x4xf32>, vector<4x8xf32>, vector<286x8xf32> -> vector<286x8xf32>
    %c0_35 = arith.constant 0 : index
    %c0_36 = arith.constant 0 : index
    %80 = vector.load %arg5[%c0_35, %c0_36] : memref<1x8xf32, #tpu.memory_space<vmem>>, vector<1x8xf32>
    %81 = vector.shape_cast %80 : vector<1x8xf32> to vector<8xf32>
    %82 = vector.shape_cast %81 : vector<8xf32> to vector<1x8xf32>
    %83 = vector.broadcast %82 : vector<1x8xf32> to vector<286x8xf32>
    %84 = arith.addf %79, %83 : vector<286x8xf32>
    %c0_37 = arith.constant 0 : index
    %c0_38 = arith.constant 0 : index
    %c0_39 = arith.constant 0 : index
    %85 = vector.load %arg6[%c0_37, %c0_38, %c0_39] : memref<1x286x8xf32, #tpu.memory_space<vmem>>, vector<1x286x8xf32>
    %86 = vector.shape_cast %85 : vector<1x286x8xf32> to vector<286x8xf32>
    %87 = vector.shape_cast %84 : vector<286x8xf32> to vector<1x286x8xf32>
    tpu.vector_store %arg6[%c0_37, %c0_38, %c0_39], %87 {strides = array<i32>} : memref<1x286x8xf32, #tpu.memory_space<vmem>>, vector<1x286x8xf32>,
    return
  }
  func.func @transform_0(%arg0: i32) -> (i32, i32, i32) {
    %c0_i32 = arith.constant 0 : i32
    %c0_i32_0 = arith.constant 0 : i32
    %c0_i32_1 = arith.constant 0 : i32
    return %arg0, %c0_i32, %c0_i32_0 : i32, i32, i32
  }
  func.func @transform_1(%arg0: i32) -> (i32, i32) {
    %c0_i32 = arith.constant 0 : i32
    %c0_i32_0 = arith.constant 0 : i32
    %c0_i32_1 = arith.constant 0 : i32
    return %c0_i32, %c0_i32_0 : i32, i32
  }
  func.func @transform_2(%arg0: i32) -> (i32, i32) {
    %c0_i32 = arith.constant 0 : i32
    %c0_i32_0 = arith.constant 0 : i32
    %c0_i32_1 = arith.constant 0 : i32
    return %c0_i32, %c0_i32_0 : i32, i32
  }
  func.func @transform_3(%arg0: i32) -> (i32, i32) {
    %c0_i32 = arith.constant 0 : i32
    %c0_i32_0 = arith.constant 0 : i32
    %c0_i32_1 = arith.constant 0 : i32
    return %c0_i32, %c0_i32_0 : i32, i32
  }
  func.func @transform_4(%arg0: i32) -> (i32, i32) {
    %c0_i32 = arith.constant 0 : i32
    %c0_i32_0 = arith.constant 0 : i32
    %c0_i32_1 = arith.constant 0 : i32
    return %c0_i32, %c0_i32_0 : i32, i32
  }
  func.func @transform_5(%arg0: i32) -> (i32, i32, i32) {
    %c0_i32 = arith.constant 0 : i32
    %c0_i32_0 = arith.constant 0 : i32
    %c0_i32_1 = arith.constant 0 : i32
    return %arg0, %c0_i32, %c0_i32_0 : i32, i32, i32
  }
}

</mosaic_0001>

<llo_original>
// kernel: tpu_custom_call.1
$region0: #{tpu_custom_call.1}
  #allocation0 [shape = 'u32[]', space=smem, size = 0x4, offset = 0x4, fixed_abs, tag = 'smem constant byte address 0x4 - core index']
  #allocation1 [shape = 'u32[144,128]{1,0:T(1,128)}', space=vmem, size = 0x12000, scoped, tag = 'internal scratch']
  %s0 = inlined_call_operand.vmem [shape: f32[2,324,4], index: 0, kind: input, shape index: {}]
  %s1 = inlined_call_operand.vmem [shape: f32[9,4], index: 1, kind: input, shape index: {}]
  %s2 = inlined_call_operand.vmem [shape: f32[1,4], index: 2, kind: input, shape index: {}]
  %s3 = inlined_call_operand.vmem [shape: f32[4,8], index: 3, kind: input, shape index: {}]
  %s4 = inlined_call_operand.vmem [shape: f32[1,8], index: 4, kind: input, shape index: {}]
  %s5 = inlined_call_operand.vmem [shape: f32[2,286,8], index: 5, kind: output, shape index: {}]
  %s6 = sld [smem:[#allocation0]]
  $region53: #{tpu_custom_call.1} parent=0
    _
  %s8 = ssub.s32 1, %s6
  %s9 = scalar_select 0, %s8, %s6
  loop: start=0, step=1, limit=4
  $region2: #{tpu_custom_call.1} parent=0 // loop_pre_header
    _
  $region3: #{tpu_custom_call.1} parent=0 // loop_header
    %s11 = sphi 0, %s15
    %p12 = scmp.ge.s32.totalorder %s11, 4
    %s21 = sphi 0, %s23
    %s24 = sphi 0, %s21
    %s25 = sphi 0, %s24
    %s41 = sphi 0, %s25
    %s45 = sphi 0, %s45
    %s47 = sphi 0, %s45
    %s48 = sphi 0, %s47
    %s62 = sphi 0, %s48
    %s66 = sphi 0, %s66
    %s68 = sphi 0, %s66
    %s69 = sphi 0, %s68
    %s83 = sphi 0, %s69
    %s87 = sphi 0, %s87
    %s89 = sphi 0, %s87
    %s90 = sphi 0, %s89
    %s104 = sphi 0, %s90
    %s108 = sphi 0, %s108
    %s110 = sphi 0, %s108
    %s111 = sphi 0, %s110
    %s125 = sphi 0, %s111
    %s131 = sphi 0, %s133
    %s134 = sphi 0, %s131
    %s135 = sphi 0, %s134
    %s151 = sphi 0, %s135
  $region4: #{tpu_custom_call.1} parent=0 // loop_header_branch
    %14 = sbr.rel (%p12) target = $region8
  $region5: #{tpu_custom_call.1} parent=0 // loop_body
    %s16 = ssub.s32 %s11, 1
    %s17 = ssub.s32 %s11, 2
    %s18 = sadd.s32 %s11, 1
    %s19 = ssub.s32 %s11, %s18
    %p20 = scmp.eq.s32.totalorder %s19, 0
    %s22 = sadd.s32 %s21, 1
    %s23 = scalar_select %p20, %s21, %s22
    %p26 = pneg %p20
    %p27 = scmp.eq.s32.totalorder %s11, 1
    %p28 = por %p26, %p27
    %p29 = scmp.ne.s32.totalorder %s21, %s24
    %p30 = scmp.eq.s32.totalorder %s11, 0
    %p31 = por %p29, %p30
    %p32 = scmp.ne.s32.totalorder %s21, %s24
    %p33 = scmp.eq.s32.totalorder %s16, 1
    %p34 = por %p32, %p33
    %p35 = scmp.ne.s32.totalorder %s24, %s25
    %p36 = scmp.eq.s32.totalorder %s16, 0
    %p37 = por %p35, %p36
    %p38 = scmp.ne.s32.totalorder %s24, %s25
    %p39 = scmp.eq.s32.totalorder %s17, 1
    %p40 = por %p38, %p39
    %p42 = scmp.ne.s32.totalorder %s25, %s41
    %p43 = scmp.eq.s32.totalorder %s17, 0
    %p44 = por %p42, %p43
    %s46 = sadd.s32 %s45, 1
    %p49 = scmp.eq.s32.totalorder %s11, 1
    %p50 = scmp.ne.s32.totalorder %s45, %s47
    %p51 = scmp.eq.s32.totalorder %s11, 0
    %p52 = por %p50, %p51
    %p53 = scmp.ne.s32.totalorder %s45, %s47
    %p54 = scmp.eq.s32.totalorder %s16, 1
    %p55 = por %p53, %p54
    %p56 = scmp.ne.s32.totalorder %s47, %s48
    %p57 = scmp.eq.s32.totalorder %s16, 0
    %p58 = por %p56, %p57
    %p59 = scmp.ne.s32.totalorder %s47, %s48
    %p60 = scmp.eq.s32.totalorder %s17, 1
    %p61 = por %p59, %p60
    %p63 = scmp.ne.s32.totalorder %s48, %s62
    %p64 = scmp.eq.s32.totalorder %s17, 0
    %p65 = por %p63, %p64
    %s67 = sadd.s32 %s66, 1
    %p70 = scmp.eq.s32.totalorder %s11, 1
    %p71 = scmp.ne.s32.totalorder %s66, %s68
    %p72 = scmp.eq.s32.totalorder %s11, 0
    %p73 = por %p71, %p72
    %p74 = scmp.ne.s32.totalorder %s66, %s68
    %p75 = scmp.eq.s32.totalorder %s16, 1
    %p76 = por %p74, %p75
    %p77 = scmp.ne.s32.totalorder %s68, %s69
    %p78 = scmp.eq.s32.totalorder %s16, 0
    %p79 = por %p77, %p78
    %p80 = scmp.ne.s32.totalorder %s68, %s69
    %p81 = scmp.eq.s32.totalorder %s17, 1
    %p82 = por %p80, %p81
    %p84 = scmp.ne.s32.totalorder %s69, %s83
    %p85 = scmp.eq.s32.totalorder %s17, 0
    %p86 = por %p84, %p85
    %s88 = sadd.s32 %s87, 1
    %p91 = scmp.eq.s32.totalorder %s11, 1
    %p92 = scmp.ne.s32.totalorder %s87, %s89
    %p93 = scmp.eq.s32.totalorder %s11, 0
    %p94 = por %p92, %p93
    %p95 = scmp.ne.s32.totalorder %s87, %s89
    %p96 = scmp.eq.s32.totalorder %s16, 1
    %p97 = por %p95, %p96
    %p98 = scmp.ne.s32.totalorder %s89, %s90
    %p99 = scmp.eq.s32.totalorder %s16, 0
    %p100 = por %p98, %p99
    %p101 = scmp.ne.s32.totalorder %s89, %s90
    %p102 = scmp.eq.s32.totalorder %s17, 1
    %p103 = por %p101, %p102
    %p105 = scmp.ne.s32.totalorder %s90, %s104
    %p106 = scmp.eq.s32.totalorder %s17, 0
    %p107 = por %p105, %p106
    %s109 = sadd.s32 %s108, 1
    %p112 = scmp.eq.s32.totalorder %s11, 1
    %p113 = scmp.ne.s32.totalorder %s108, %s110
    %p114 = scmp.eq.s32.totalorder %s11, 0
    %p115 = por %p113, %p114
    %p116 = scmp.ne.s32.totalorder %s108, %s110
    %p117 = scmp.eq.s32.totalorder %s16, 1
    %p118 = por %p116, %p117
    %p119 = scmp.ne.s32.totalorder %s110, %s111
    %p120 = scmp.eq.s32.totalorder %s16, 0
    %p121 = por %p119, %p120
    %p122 = scmp.ne.s32.totalorder %s110, %s111
    %p123 = scmp.eq.s32.totalorder %s17, 1
    %p124 = por %p122, %p123
    %p126 = scmp.ne.s32.totalorder %s111, %s125
    %p127 = scmp.eq.s32.totalorder %s17, 0
    %p128 = por %p126, %p127
    %s129 = ssub.s32 %s11, %s18
    %p130 = scmp.eq.s32.totalorder %s129, 0
    %s132 = sadd.s32 %s131, 1
    %s133 = scalar_select %p130, %s131, %s132
    %p136 = pneg %p130
    %p137 = scmp.eq.s32.totalorder %s11, 1
    %p138 = por %p136, %p137
    %p139 = scmp.ne.s32.totalorder %s131, %s134
    %p140 = scmp.eq.s32.totalorder %s11, 0
    %p141 = por %p139, %p140
    %p142 = scmp.ne.s32.totalorder %s131, %s134
    %p143 = scmp.eq.s32.totalorder %s16, 1
    %p144 = por %p142, %p143
    %p145 = scmp.ne.s32.totalorder %s134, %s135
    %p146 = scmp.eq.s32.totalorder %s16, 0
    %p147 = por %p145, %p146
    %p148 = scmp.ne.s32.totalorder %s134, %s135
    %p149 = scmp.eq.s32.totalorder %s17, 1
    %p150 = por %p148, %p149
    %p152 = scmp.ne.s32.totalorder %s135, %s151
    %p153 = scmp.eq.s32.totalorder %s17, 0
    %p154 = por %p152, %p153
    %p155 = scmp.le.s32.totalorder 1, %s11
    %p156 = scmp.lt.s32.totalorder %s11, 3
    %p157 = pnand %p155, %p156
    %p158 = pneg %p157
    // Predicated region
    $region9: #{tpu_custom_call.1} parent=5 // pred_check
      _
    $region10: #{tpu_custom_call.1} parent=5 // pred_check_branch
      %160 = sbr.rel (%p157) target = $region12
    $region11: #{tpu_custom_call.1} parent=5 // pred_region
      %s161 = ssub.s32 %s11, 1
      // Predicated region
      $region13: #{tpu_custom_call.1} parent=11 // pred_check
        %p162 = pneg %p58
      $region14: #{tpu_custom_call.1} parent=11 // pred_check_branch
        %164 = sbr.rel (%p162) target = $region16
      $region15: #{tpu_custom_call.1} parent=11 // pred_region
        _
      $region16: #{tpu_custom_call.1} parent=11 // pred_fallthru
        _
      // Predicated region
      $region17: #{tpu_custom_call.1} parent=11 // pred_check
        %p165 = pneg %p79
      $region18: #{tpu_custom_call.1} parent=11 // pred_check_branch
        %167 = sbr.rel (%p165) target = $region20
      $region19: #{tpu_custom_call.1} parent=11 // pred_region
        _
      $region20: #{tpu_custom_call.1} parent=11 // pred_fallthru
        _
      // Predicated region
      $region21: #{tpu_custom_call.1} parent=11 // pred_check
        %p168 = pneg %p100
      $region22: #{tpu_custom_call.1} parent=11 // pred_check_branch
        %170 = sbr.rel (%p168) target = $region24
      $region23: #{tpu_custom_call.1} parent=11 // pred_region
        _
      $region24: #{tpu_custom_call.1} parent=11 // pred_fallthru
        _
      // Predicated region
      $region25: #{tpu_custom_call.1} parent=11 // pred_check
        %p171 = pneg %p121
      $region26: #{tpu_custom_call.1} parent=11 // pred_check_branch
        %173 = sbr.rel (%p171) target = $region28
      $region27: #{tpu_custom_call.1} parent=11 // pred_region
        _
      $region28: #{tpu_custom_call.1} parent=11 // pred_fallthru
        _
    $region12: #{tpu_custom_call.1} parent=5 // pred_fallthru
      _
    %p174 = scmp.lt.s32.totalorder %s11, 2
    // Predicated region
    $region29: #{tpu_custom_call.1} parent=5 // pred_check
      %p175 = pneg %p174
    $region30: #{tpu_custom_call.1} parent=5 // pred_check_branch
      %177 = sbr.rel (%p175) target = $region32
    $region31: #{tpu_custom_call.1} parent=5 // pred_region
      // Predicated region
      $region33: #{tpu_custom_call.1} parent=31 // pred_check
        %p178 = pneg %p31
      $region34: #{tpu_custom_call.1} parent=31 // pred_check_branch
        %180 = sbr.rel (%p178) target = $region36
      $region35: #{tpu_custom_call.1} parent=31 // pred_region
        %p181 = scmp.lt.s32.totalorder %s11, 1
        %s182 = scalar_select %p181, %s11, 1
        %s183 = smul.addr %s182, 41
        %s184 = smul.addr %s183, 8
        %s185 = scalar_lea.vmem %s0, %s184
      $region36: #{tpu_custom_call.1} parent=31 // pred_fallthru
        _
    $region32: #{tpu_custom_call.1} parent=5 // pred_fallthru
      _
    %p186 = scmp.le.s32.totalorder 1, %s11
    %p187 = scmp.lt.s32.totalorder %s11, 3
    %p188 = pnand %p186, %p187
    %p189 = pneg %p188
    // Predicated region
    $region37: #{tpu_custom_call.1} parent=5 // pred_check
      _
    $region38: #{tpu_custom_call.1} parent=5 // pred_check_branch
      %191 = sbr.rel (%p188) target = $region40
    $region39: #{tpu_custom_call.1} parent=5 // pred_region
      %s192 = ssub.s32 %s11, 1
      %p193 = scmp.lt.s32.totalorder %s16, 1
      %s194 = scalar_select %p193, %s16, 1
      %s195 = smul.addr %s194, 41
      %s196 = smul.addr %s195, 8
      %s197 = scalar_lea.vmem %s0, %s196
      %p198 = pneg %p37
      %p199 = pneg %p34
      %p200 = pneg %p58
      %p201 = pneg %p55
      %p202 = pneg %p79
      %p203 = pneg %p76
      %p204 = pneg %p100
      %p205 = pneg %p97
      %p206 = pneg %p121
      %p207 = pneg %p118
      %p208 = pneg %p147
      %p209 = pneg %p144
      %p210 = scmp.lt.s32.totalorder %s16, 1
      %s211 = scalar_select %p210, %s16, 1
      %s212 = smul.addr %s211, 36
      %s213 = smul.addr %s212, 8
      %s214 = scalar_lea.vmem %s5, %s213
      %p215 = scmp.lt.s32.totalorder %s16, 1
      %s216 = scalar_select %p215, %s16, 1
      %s217 = smul.addr %s216, 41
      %s218 = smul.addr %s217, 8
      %s219 = scalar_lea.vmem %s0, %s218
      %p220 = scmp.lt.s32.totalorder %s16, 1
      %s221 = scalar_select %p220, %s16, 1
      %s222 = smul.addr %s221, 36
      %s223 = smul.addr %s222, 8
      %s224 = scalar_lea.vmem %s5, %s223
      %v225 = vld [vmem:[%s219] sm:$0xff]
      %v226 = vld [vmem:[%s219 + $0x8] sm:$0xff]
      %v227 = vld [vmem:[%s219 + $0x10] sm:$0xff]
      %v228 = vld [vmem:[%s219 + $0x18] sm:$0xff]
      %v229 = vld [vmem:[%s219 + $0x20] sm:$0xff]
      %v230 = vld [vmem:[%s219 + $0x28] sm:$0xff]
      %v231 = vld [vmem:[%s219 + $0x30] sm:$0xff]
      %v232 = vld [vmem:[%s219 + $0x38] sm:$0xff]
      %v233 = vld [vmem:[%s219 + $0x40] sm:$0xff]
      %v234 = vld [vmem:[%s219 + $0x48] sm:$0xff]
      %v235 = vld [vmem:[%s219 + $0x50] sm:$0xff]
      %v236 = vld [vmem:[%s219 + $0x58] sm:$0xff]
      %v237 = vld [vmem:[%s219 + $0x60] sm:$0xff]
      %v238 = vld [vmem:[%s219 + $0x68] sm:$0xff]
      %v239 = vld [vmem:[%s219 + $0x70] sm:$0xff]
      %v240 = vld [vmem:[%s219 + $0x78] sm:$0xff]
      %v241 = vld [vmem:[%s219 + $0x80] sm:$0xff]
      %v242 = vld [vmem:[%s219 + $0x88] sm:$0xff]
      %v243 = vld [vmem:[%s219 + $0x90] sm:$0xff]
      %v244 = vld [vmem:[%s219 + $0x98] sm:$0xff]
      %v245 = vld [vmem:[%s219 + $0xa0] sm:$0xff]
      %v246 = vld [vmem:[%s219 + $0xa8] sm:$0xff]
      %v247 = vld [vmem:[%s219 + $0xb0] sm:$0xff]
      %v248 = vld [vmem:[%s219 + $0xb8] sm:$0xff]
      %v249 = vld [vmem:[%s219 + $0xc0] sm:$0xff]
      %v250 = vld [vmem:[%s219 + $0xc8] sm:$0xff]
      %v251 = vld [vmem:[%s219 + $0xd0] sm:$0xff]
      %v252 = vld [vmem:[%s219 + $0xd8] sm:$0xff]
      %v253 = vld [vmem:[%s219 + $0xe0] sm:$0xff]
      %v254 = vld [vmem:[%s219 + $0xe8] sm:$0xff]
      %v255 = vld [vmem:[%s219 + $0xf0] sm:$0xff]
      %v256 = vld [vmem:[%s219 + $0xf8] sm:$0xff]
      %v257 = vld [vmem:[%s219 + $0x100] sm:$0xff]
      %v258 = vld [vmem:[%s219 + $0x108] sm:$0xff]
      %v259 = vld [vmem:[%s219 + $0x110] sm:$0xff]
      %v260 = vld [vmem:[%s219 + $0x118] sm:$0x3f]
      %v261 = vld [vmem:[%s1] sm:$0x1]
      %v262 = vlaneseq
      %v263 = vshrl.u32 %v262, 7
      %v264 = vsub.s32 0, %v263
      %v265 = vrot.slane %v261, %v264
      %v266 = vmul.f32 %v225, %v265
      %v267 = vmul.f32 %v226, %v265
      %v268 = vmul.f32 %v227, %v265
      %v269 = vmul.f32 %v228, %v265
      %v270 = vmul.f32 %v229, %v265
      %v271 = vmul.f32 %v230, %v265
      %v272 = vmul.f32 %v231, %v265
      %v273 = vmul.f32 %v232, %v265
      %v274 = vmul.f32 %v233, %v265
      %v275 = vmul.f32 %v234, %v265
      %v276 = vmul.f32 %v235, %v265
      %v277 = vmul.f32 %v236, %v265
      %v278 = vmul.f32 %v237, %v265
      %v279 = vmul.f32 %v238, %v265
      %v280 = vmul.f32 %v239, %v265
      %v281 = vmul.f32 %v240, %v265
      %v282 = vmul.f32 %v241, %v265
      %v283 = vmul.f32 %v242, %v265
      %v284 = vmul.f32 %v243, %v265
      %v285 = vmul.f32 %v244, %v265
      %v286 = vmul.f32 %v245, %v265
      %v287 = vmul.f32 %v246, %v265
      %v288 = vmul.f32 %v247, %v265
      %v289 = vmul.f32 %v248, %v265
      %v290 = vmul.f32 %v249, %v265
      %v291 = vmul.f32 %v250, %v265
      %v292 = vmul.f32 %v251, %v265
      %v293 = vmul.f32 %v252, %v265
      %v294 = vmul.f32 %v253, %v265
      %v295 = vmul.f32 %v254, %v265
      %v296 = vmul.f32 %v255, %v265
      %v297 = vmul.f32 %v256, %v265
      %v298 = vmul.f32 %v257, %v265
      %v299 = vmul.f32 %v258, %v265
      %v300 = vmul.f32 %v259, %v265
      %v301 = vmul.f32 %v260, %v265
      %v302 = vadd.f32 %v266, 0.0
      %v303 = vadd.f32 %v267, 0.0
      %v304 = vadd.f32 %v268, 0.0
      %v305 = vadd.f32 %v269, 0.0
      %v306 = vadd.f32 %v270, 0.0
      %v307 = vadd.f32 %v271, 0.0
      %v308 = vadd.f32 %v272, 0.0
      %v309 = vadd.f32 %v273, 0.0
      %v310 = vadd.f32 %v274, 0.0
      %v311 = vadd.f32 %v275, 0.0
      %v312 = vadd.f32 %v276, 0.0
      %v313 = vadd.f32 %v277, 0.0
      %v314 = vadd.f32 %v278, 0.0
      %v315 = vadd.f32 %v279, 0.0
      %v316 = vadd.f32 %v280, 0.0
      %v317 = vadd.f32 %v281, 0.0
      %v318 = vadd.f32 %v282, 0.0
      %v319 = vadd.f32 %v283, 0.0
      %v320 = vadd.f32 %v284, 0.0
      %v321 = vadd.f32 %v285, 0.0
      %v322 = vadd.f32 %v286, 0.0
      %v323 = vadd.f32 %v287, 0.0
      %v324 = vadd.f32 %v288, 0.0
      %v325 = vadd.f32 %v289, 0.0
      %v326 = vadd.f32 %v290, 0.0
      %v327 = vadd.f32 %v291, 0.0
      %v328 = vadd.f32 %v292, 0.0
      %v329 = vadd.f32 %v293, 0.0
      %v330 = vadd.f32 %v294, 0.0
      %v331 = vadd.f32 %v295, 0.0
      %v332 = vadd.f32 %v296, 0.0
      %v333 = vadd.f32 %v297, 0.0
      %v334 = vadd.f32 %v298, 0.0
      %v335 = vadd.f32 %v299, 0.0
      %v336 = vadd.f32 %v300, 0.0
      %v337 = vadd.f32 %v301, 0.0
      %v338 = vld [vmem:[%s219 + $0x1] sm:$0xff]
      %v339 = vld [vmem:[%s219 + $0x9] sm:$0xff]
      %v340 = vld [vmem:[%s219 + $0x11] sm:$0xff]
      %v341 = vld [vmem:[%s219 + $0x19] sm:$0xff]
      %v342 = vld [vmem:[%s219 + $0x21] sm:$0xff]
      %v343 = vld [vmem:[%s219 + $0x29] sm:$0xff]
      %v344 = vld [vmem:[%s219 + $0x31] sm:$0xff]
      %v345 = vld [vmem:[%s219 + $0x39] sm:$0xff]
      %v346 = vld [vmem:[%s219 + $0x41] sm:$0xff]
      %v347 = vld [vmem:[%s219 + $0x49] sm:$0xff]
      %v348 = vld [vmem:[%s219 + $0x51] sm:$0xff]
      %v349 = vld [vmem:[%s219 + $0x59] sm:$0xff]
      %v350 = vld [vmem:[%s219 + $0x61] sm:$0xff]
      %v351 = vld [vmem:[%s219 + $0x69] sm:$0xff]
      %v352 = vld [vmem:[%s219 + $0x71] sm:$0xff]
      %v353 = vld [vmem:[%s219 + $0x79] sm:$0xff]
      %v354 = vld [vmem:[%s219 + $0x81] sm:$0xff]
      %v355 = vld [vmem:[%s219 + $0x89] sm:$0xff]
      %v356 = vld [vmem:[%s219 + $0x91] sm:$0xff]
      %v357 = vld [vmem:[%s219 + $0x99] sm:$0xff]
      %v358 = vld [vmem:[%s219 + $0xa1] sm:$0xff]
      %v359 = vld [vmem:[%s219 + $0xa9] sm:$0xff]
      %v360 = vld [vmem:[%s219 + $0xb1] sm:$0xff]
      %v361 = vld [vmem:[%s219 + $0xb9] sm:$0xff]
      %v362 = vld [vmem:[%s219 + $0xc1] sm:$0xff]
      %v363 = vld [vmem:[%s219 + $0xc9] sm:$0xff]
      %v364 = vld [vmem:[%s219 + $0xd1] sm:$0xff]
      %v365 = vld [vmem:[%s219 + $0xd9] sm:$0xff]
      %v366 = vld [vmem:[%s219 + $0xe1] sm:$0xff]
      %v367 = vld [vmem:[%s219 + $0xe9] sm:$0xff]
      %v368 = vld [vmem:[%s219 + $0xf1] sm:$0xff]
      %v369 = vld [vmem:[%s219 + $0xf9] sm:$0xff]
      %v370 = vld [vmem:[%s219 + $0x101] sm:$0xff]
      %v371 = vld [vmem:[%s219 + $0x109] sm:$0xff]
      %v372 = vld [vmem:[%s219 + $0x111] sm:$0xff]
      %v373 = vld [vmem:[%s219 + $0x119] sm:$0x3f]
      %v374 = vld [vmem:[%s1 + $0x1] sm:$0x1]
      %v375 = vlaneseq
      %v376 = vshrl.u32 %v375, 7
      %v377 = vsub.s32 0, %v376
      %v378 = vrot.slane %v374, %v377
      %v379 = vmul.f32 %v338, %v378
      %v380 = vmul.f32 %v339, %v378
      %v381 = vmul.f32 %v340, %v378
      %v382 = vmul.f32 %v341, %v378
      %v383 = vmul.f32 %v342, %v378
      %v384 = vmul.f32 %v343, %v378
      %v385 = vmul.f32 %v344, %v378
      %v386 = vmul.f32 %v345, %v378
      %v387 = vmul.f32 %v346, %v378
      %v388 = vmul.f32 %v347, %v378
      %v389 = vmul.f32 %v348, %v378
      %v390 = vmul.f32 %v349, %v378
      %v391 = vmul.f32 %v350, %v378
      %v392 = vmul.f32 %v351, %v378
      %v393 = vmul.f32 %v352, %v378
      %v394 = vmul.f32 %v353, %v378
      %v395 = vmul.f32 %v354, %v378
      %v396 = vmul.f32 %v355, %v378
      %v397 = vmul.f32 %v356, %v378
      %v398 = vmul.f32 %v357, %v378
      %v399 = vmul.f32 %v358, %v378
      %v400 = vmul.f32 %v359, %v378
      %v401 = vmul.f32 %v360, %v378
      %v402 = vmul.f32 %v361, %v378
      %v403 = vmul.f32 %v362, %v378
      %v404 = vmul.f32 %v363, %v378
      %v405 = vmul.f32 %v364, %v378
      %v406 = vmul.f32 %v365, %v378
      %v407 = vmul.f32 %v366, %v378
      %v408 = vmul.f32 %v367, %v378
      %v409 = vmul.f32 %v368, %v378
      %v410 = vmul.f32 %v369, %v378
      %v411 = vmul.f32 %v370, %v378
      %v412 = vmul.f32 %v371, %v378
      %v413 = vmul.f32 %v372, %v378
      %v414 = vmul.f32 %v373, %v378
      %v415 = vadd.f32 %v302, %v379
      %v416 = vadd.f32 %v303, %v380
      %v417 = vadd.f32 %v304, %v381
      %v418 = vadd.f32 %v305, %v382
      %v419 = vadd.f32 %v306, %v383
      %v420 = vadd.f32 %v307, %v384
      %v421 = vadd.f32 %v308, %v385
      %v422 = vadd.f32 %v309, %v386
      %v423 = vadd.f32 %v310, %v387
      %v424 = vadd.f32 %v311, %v388
      %v425 = vadd.f32 %v312, %v389
      %v426 = vadd.f32 %v313, %v390
      %v427 = vadd.f32 %v314, %v391
      %v428 = vadd.f32 %v315, %v392
      %v429 = vadd.f32 %v316, %v393
      %v430 = vadd.f32 %v317, %v394
      %v431 = vadd.f32 %v318, %v395
      %v432 = vadd.f32 %v319, %v396
      %v433 = vadd.f32 %v320, %v397
      %v434 = vadd.f32 %v321, %v398
      %v435 = vadd.f32 %v322, %v399
      %v436 = vadd.f32 %v323, %v400
      %v437 = vadd.f32 %v324, %v401
      %v438 = vadd.f32 %v325, %v402
      %v439 = vadd.f32 %v326, %v403
      %v440 = vadd.f32 %v327, %v404
      %v441 = vadd.f32 %v328, %v405
      %v442 = vadd.f32 %v329, %v406
      %v443 = vadd.f32 %v330, %v407
      %v444 = vadd.f32 %v331, %v408
      %v445 = vadd.f32 %v332, %v409
      %v446 = vadd.f32 %v333, %v410
      %v447 = vadd.f32 %v334, %v411
      %v448 = vadd.f32 %v335, %v412
      %v449 = vadd.f32 %v336, %v413
      %v450 = vadd.f32 %v337, %v414
      %v451 = vld [vmem:[%s219 + $0x2] sm:$0xff]
      %v452 = vld [vmem:[%s219 + $0xa] sm:$0xff]
      %v453 = vld [vmem:[%s219 + $0x12] sm:$0xff]
      %v454 = vld [vmem:[%s219 + $0x1a] sm:$0xff]
      %v455 = vld [vmem:[%s219 + $0x22] sm:$0xff]
      %v456 = vld [vmem:[%s219 + $0x2a] sm:$0xff]
      %v457 = vld [vmem:[%s219 + $0x32] sm:$0xff]
      %v458 = vld [vmem:[%s219 + $0x3a] sm:$0xff]
      %v459 = vld [vmem:[%s219 + $0x42] sm:$0xff]
      %v460 = vld [vmem:[%s219 + $0x4a] sm:$0xff]
      %v461 = vld [vmem:[%s219 + $0x52] sm:$0xff]
      %v462 = vld [vmem:[%s219 + $0x5a] sm:$0xff]
      %v463 = vld [vmem:[%s219 + $0x62] sm:$0xff]
      %v464 = vld [vmem:[%s219 + $0x6a] sm:$0xff]
      %v465 = vld [vmem:[%s219 + $0x72] sm:$0xff]
      %v466 = vld [vmem:[%s219 + $0x7a] sm:$0xff]
      %v467 = vld [vmem:[%s219 + $0x82] sm:$0xff]
      %v468 = vld [vmem:[%s219 + $0x8a] sm:$0xff]
      %v469 = vld [vmem:[%s219 + $0x92] sm:$0xff]
      %v470 = vld [vmem:[%s219 + $0x9a] sm:$0xff]
      %v471 = vld [vmem:[%s219 + $0xa2] sm:$0xff]
      %v472 = vld [vmem:[%s219 + $0xaa] sm:$0xff]
      %v473 = vld [vmem:[%s219 + $0xb2] sm:$0xff]
      %v474 = vld [vmem:[%s219 + $0xba] sm:$0xff]
      %v475 = vld [vmem:[%s219 + $0xc2] sm:$0xff]
      %v476 = vld [vmem:[%s219 + $0xca] sm:$0xff]
      %v477 = vld [vmem:[%s219 + $0xd2] sm:$0xff]
      %v478 = vld [vmem:[%s219 + $0xda] sm:$0xff]
      %v479 = vld [vmem:[%s219 + $0xe2] sm:$0xff]
      %v480 = vld [vmem:[%s219 + $0xea] sm:$0xff]
      %v481 = vld [vmem:[%s219 + $0xf2] sm:$0xff]
      %v482 = vld [vmem:[%s219 + $0xfa] sm:$0xff]
      %v483 = vld [vmem:[%s219 + $0x102] sm:$0xff]
      %v484 = vld [vmem:[%s219 + $0x10a] sm:$0xff]
      %v485 = vld [vmem:[%s219 + $0x112] sm:$0xff]
      %v486 = vld [vmem:[%s219 + $0x11a] sm:$0x3f]
      %v487 = vld [vmem:[%s1 + $0x2] sm:$0x1]
      %v488 = vlaneseq
      %v489 = vshrl.u32 %v488, 7
      %v490 = vsub.s32 0, %v489
      %v491 = vrot.slane %v487, %v490
      %v492 = vmul.f32 %v451, %v491
      %v493 = vmul.f32 %v452, %v491
      %v494 = vmul.f32 %v453, %v491
      %v495 = vmul.f32 %v454, %v491
      %v496 = vmul.f32 %v455, %v491
      %v497 = vmul.f32 %v456, %v491
      %v498 = vmul.f32 %v457, %v491
      %v499 = vmul.f32 %v458, %v491
      %v500 = vmul.f32 %v459, %v491
      %v501 = vmul.f32 %v460, %v491
      %v502 = vmul.f32 %v461, %v491
      %v503 = vmul.f32 %v462, %v491
      %v504 = vmul.f32 %v463, %v491
      %v505 = vmul.f32 %v464, %v491
      %v506 = vmul.f32 %v465, %v491
      %v507 = vmul.f32 %v466, %v491
      %v508 = vmul.f32 %v467, %v491
      %v509 = vmul.f32 %v468, %v491
      %v510 = vmul.f32 %v469, %v491
      %v511 = vmul.f32 %v470, %v491
      %v512 = vmul.f32 %v471, %v491
      %v513 = vmul.f32 %v472, %v491
      %v514 = vmul.f32 %v473, %v491
      %v515 = vmul.f32 %v474, %v491
      %v516 = vmul.f32 %v475, %v491
      %v517 = vmul.f32 %v476, %v491
      %v518 = vmul.f32 %v477, %v491
      %v519 = vmul.f32 %v478, %v491
      %v520 = vmul.f32 %v479, %v491
      %v521 = vmul.f32 %v480, %v491
      %v522 = vmul.f32 %v481, %v491
      %v523 = vmul.f32 %v482, %v491
      %v524 = vmul.f32 %v483, %v491
      %v525 = vmul.f32 %v484, %v491
      %v526 = vmul.f32 %v485, %v491
      %v527 = vmul.f32 %v486, %v491
      %v528 = vadd.f32 %v415, %v492
      %v529 = vadd.f32 %v416, %v493
      %v530 = vadd.f32 %v417, %v494
      %v531 = vadd.f32 %v418, %v495
      %v532 = vadd.f32 %v419, %v496
      %v533 = vadd.f32 %v420, %v497
      %v534 = vadd.f32 %v421, %v498
      %v535 = vadd.f32 %v422, %v499
      %v536 = vadd.f32 %v423, %v500
      %v537 = vadd.f32 %v424, %v501
      %v538 = vadd.f32 %v425, %v502
      %v539 = vadd.f32 %v426, %v503
      %v540 = vadd.f32 %v427, %v504
      %v541 = vadd.f32 %v428, %v505
      %v542 = vadd.f32 %v429, %v506
      %v543 = vadd.f32 %v430, %v507
      %v544 = vadd.f32 %v431, %v508
      %v545 = vadd.f32 %v432, %v509
      %v546 = vadd.f32 %v433, %v510
      %v547 = vadd.f32 %v434, %v511
      %v548 = vadd.f32 %v435, %v512
      %v549 = vadd.f32 %v436, %v513
      %v550 = vadd.f32 %v437, %v514
      %v551 = vadd.f32 %v438, %v515
      %v552 = vadd.f32 %v439, %v516
      %v553 = vadd.f32 %v440, %v517
      %v554 = vadd.f32 %v441, %v518
      %v555 = vadd.f32 %v442, %v519
      %v556 = vadd.f32 %v443, %v520
      %v557 = vadd.f32 %v444, %v521
      %v558 = vadd.f32 %v445, %v522
      %v559 = vadd.f32 %v446, %v523
      %v560 = vadd.f32 %v447, %v524
      %v561 = vadd.f32 %v448, %v525
      %v562 = vadd.f32 %v449, %v526
      %v563 = vadd.f32 %v450, %v527
      %v564 = vld [vmem:[%s219 + $0x11a] sm:$0xff]
      %v565 = vld [vmem:[%s219 + $0x122] sm:$0xff]
      %v566 = vld [vmem:[%s219 + $0x12a] sm:$0x3f]
      %v567 = vld [vmem:[%s1 + $0x3] sm:$0x1]
      %v568 = vlaneseq
      %v569 = vshrl.u32 %v568, 7
      %v570 = vsub.s32 0, %v569
      %v571 = vrot.slane %v567, %v570
      %v572 = vmul.f32 %v453, %v571
      %v573 = vmul.f32 %v454, %v571
      %v574 = vmul.f32 %v455, %v571
      %v575 = vmul.f32 %v456, %v571
      %v576 = vmul.f32 %v457, %v571
      %v577 = vmul.f32 %v458, %v571
      %v578 = vmul.f32 %v459, %v571
      %v579 = vmul.f32 %v460, %v571
      %v580 = vmul.f32 %v461, %v571
      %v581 = vmul.f32 %v462, %v571
      %v582 = vmul.f32 %v463, %v571
      %v583 = vmul.f32 %v464, %v571
      %v584 = vmul.f32 %v465, %v571
      %v585 = vmul.f32 %v466, %v571
      %v586 = vmul.f32 %v467, %v571
      %v587 = vmul.f32 %v468, %v571
      %v588 = vmul.f32 %v469, %v571
      %v589 = vmul.f32 %v470, %v571
      %v590 = vmul.f32 %v471, %v571
      %v591 = vmul.f32 %v472, %v571
      %v592 = vmul.f32 %v473, %v571
      %v593 = vmul.f32 %v474, %v571
      %v594 = vmul.f32 %v475, %v571
      %v595 = vmul.f32 %v476, %v571
      %v596 = vmul.f32 %v477, %v571
      %v597 = vmul.f32 %v478, %v571
      %v598 = vmul.f32 %v479, %v571
      %v599 = vmul.f32 %v480, %v571
      %v600 = vmul.f32 %v481, %v571
      %v601 = vmul.f32 %v482, %v571
      %v602 = vmul.f32 %v483, %v571
      %v603 = vmul.f32 %v484, %v571
      %v604 = vmul.f32 %v485, %v571
      %v605 = vmul.f32 %v564, %v571
      %v606 = vmul.f32 %v565, %v571
      %v607 = vmul.f32 %v566, %v571
      %v608 = vadd.f32 %v528, %v572
      %v609 = vadd.f32 %v529, %v573
      %v610 = vadd.f32 %v530, %v574
      %v611 = vadd.f32 %v531, %v575
      %v612 = vadd.f32 %v532, %v576
      %v613 = vadd.f32 %v533, %v577
      %v614 = vadd.f32 %v534, %v578
      %v615 = vadd.f32 %v535, %v579
      %v616 = vadd.f32 %v536, %v580
      %v617 = vadd.f32 %v537, %v581
      %v618 = vadd.f32 %v538, %v582
      %v619 = vadd.f32 %v539, %v583
      %v620 = vadd.f32 %v540, %v584
      %v621 = vadd.f32 %v541, %v585
      %v622 = vadd.f32 %v542, %v586
      %v623 = vadd.f32 %v543, %v587
      %v624 = vadd.f32 %v544, %v588
      %v625 = vadd.f32 %v545, %v589
      %v626 = vadd.f32 %v546, %v590
      %v627 = vadd.f32 %v547, %v591
      %v628 = vadd.f32 %v548, %v592
      %v629 = vadd.f32 %v549, %v593
      %v630 = vadd.f32 %v550, %v594
      %v631 = vadd.f32 %v551, %v595
      %v632 = vadd.f32 %v552, %v596
      %v633 = vadd.f32 %v553, %v597
      %v634 = vadd.f32 %v554, %v598
      %v635 = vadd.f32 %v555, %v599
      %v636 = vadd.f32 %v556, %v600
      %v637 = vadd.f32 %v557, %v601
      %v638 = vadd.f32 %v558, %v602
      %v639 = vadd.f32 %v559, %v603
      %v640 = vadd.f32 %v560, %v604
      %v641 = vadd.f32 %v561, %v605
      %v642 = vadd.f32 %v562, %v606
      %v643 = vadd.f32 %v563, %v607
      %v644 = vld [vmem:[%s219 + $0x13] sm:$0xff]
      %v645 = vld [vmem:[%s219 + $0x1b] sm:$0xff]
      %v646 = vld [vmem:[%s219 + $0x23] sm:$0xff]
      %v647 = vld [vmem:[%s219 + $0x2b] sm:$0xff]
      %v648 = vld [vmem:[%s219 + $0x33] sm:$0xff]
      %v649 = vld [vmem:[%s219 + $0x3b] sm:$0xff]
      %v650 = vld [vmem:[%s219 + $0x43] sm:$0xff]
      %v651 = vld [vmem:[%s219 + $0x4b] sm:$0xff]
      %v652 = vld [vmem:[%s219 + $0x53] sm:$0xff]
      %v653 = vld [vmem:[%s219 + $0x5b] sm:$0xff]
      %v654 = vld [vmem:[%s219 + $0x63] sm:$0xff]
      %v655 = vld [vmem:[%s219 + $0x6b] sm:$0xff]
      %v656 = vld [vmem:[%s219 + $0x73] sm:$0xff]
      %v657 = vld [vmem:[%s219 + $0x7b] sm:$0xff]
      %v658 = vld [vmem:[%s219 + $0x83] sm:$0xff]
      %v659 = vld [vmem:[%s219 + $0x8b] sm:$0xff]
      %v660 = vld [vmem:[%s219 + $0x93] sm:$0xff]
      %v661 = vld [vmem:[%s219 + $0x9b] sm:$0xff]
      %v662 = vld [vmem:[%s219 + $0xa3] sm:$0xff]
      %v663 = vld [vmem:[%s219 + $0xab] sm:$0xff]
      %v664 = vld [vmem:[%s219 + $0xb3] sm:$0xff]
      %v665 = vld [vmem:[%s219 + $0xbb] sm:$0xff]
      %v666 = vld [vmem:[%s219 + $0xc3] sm:$0xff]
      %v667 = vld [vmem:[%s219 + $0xcb] sm:$0xff]
      %v668 = vld [vmem:[%s219 + $0xd3] sm:$0xff]
      %v669 = vld [vmem:[%s219 + $0xdb] sm:$0xff]
      %v670 = vld [vmem:[%s219 + $0xe3] sm:$0xff]
      %v671 = vld [vmem:[%s219 + $0xeb] sm:$0xff]
      %v672 = vld [vmem:[%s219 + $0xf3] sm:$0xff]
      %v673 = vld [vmem:[%s219 + $0xfb] sm:$0xff]
      %v674 = vld [vmem:[%s219 + $0x103] sm:$0xff]
      %v675 = vld [vmem:[%s219 + $0x10b] sm:$0xff]
      %v676 = vld [vmem:[%s219 + $0x113] sm:$0xff]
      %v677 = vld [vmem:[%s219 + $0x11b] sm:$0xff]
      %v678 = vld [vmem:[%s219 + $0x123] sm:$0xff]
      %v679 = vld [vmem:[%s219 + $0x12b] sm:$0x3f]
      %v680 = vld [vmem:[%s1 + $0x4] sm:$0x1]
      %v681 = vlaneseq
      %v682 = vshrl.u32 %v681, 7
      %v683 = vsub.s32 0, %v682
      %v684 = vrot.slane %v680, %v683
      %v685 = vmul.f32 %v644, %v684
      %v686 = vmul.f32 %v645, %v684
      %v687 = vmul.f32 %v646, %v684
      %v688 = vmul.f32 %v647, %v684
      %v689 = vmul.f32 %v648, %v684
      %v690 = vmul.f32 %v649, %v684
      %v691 = vmul.f32 %v650, %v684
      %v692 = vmul.f32 %v651, %v684
      %v693 = vmul.f32 %v652, %v684
      %v694 = vmul.f32 %v653, %v684
      %v695 = vmul.f32 %v654, %v684
      %v696 = vmul.f32 %v655, %v684
      %v697 = vmul.f32 %v656, %v684
      %v698 = vmul.f32 %v657, %v684
      %v699 = vmul.f32 %v658, %v684
      %v700 = vmul.f32 %v659, %v684
      %v701 = vmul.f32 %v660, %v684
      %v702 = vmul.f32 %v661, %v684
      %v703 = vmul.f32 %v662, %v684
      %v704 = vmul.f32 %v663, %v684
      %v705 = vmul.f32 %v664, %v684
      %v706 = vmul.f32 %v665, %v684
      %v707 = vmul.f32 %v666, %v684
      %v708 = vmul.f32 %v667, %v684
      %v709 = vmul.f32 %v668, %v684
      %v710 = vmul.f32 %v669, %v684
      %v711 = vmul.f32 %v670, %v684
      %v712 = vmul.f32 %v671, %v684
      %v713 = vmul.f32 %v672, %v684
      %v714 = vmul.f32 %v673, %v684
      %v715 = vmul.f32 %v674, %v684
      %v716 = vmul.f32 %v675, %v684
      %v717 = vmul.f32 %v676, %v684
      %v718 = vmul.f32 %v677, %v684
      %v719 = vmul.f32 %v678, %v684
      %v720 = vmul.f32 %v679, %v684
      %v721 = vadd.f32 %v608, %v685
      %v722 = vadd.f32 %v609, %v686
      %v723 = vadd.f32 %v610, %v687
      %v724 = vadd.f32 %v611, %v688
      %v725 = vadd.f32 %v612, %v689
      %v726 = vadd.f32 %v613, %v690
      %v727 = vadd.f32 %v614, %v691
      %v728 = vadd.f32 %v615, %v692
      %v729 = vadd.f32 %v616, %v693
      %v730 = vadd.f32 %v617, %v694
      %v731 = vadd.f32 %v618, %v695
      %v732 = vadd.f32 %v619, %v696
      %v733 = vadd.f32 %v620, %v697
      %v734 = vadd.f32 %v621, %v698
      %v735 = vadd.f32 %v622, %v699
      %v736 = vadd.f32 %v623, %v700
      %v737 = vadd.f32 %v624, %v701
      %v738 = vadd.f32 %v625, %v702
      %v739 = vadd.f32 %v626, %v703
      %v740 = vadd.f32 %v627, %v704
      %v741 = vadd.f32 %v628, %v705
      %v742 = vadd.f32 %v629, %v706
      %v743 = vadd.f32 %v630, %v707
      %v744 = vadd.f32 %v631, %v708
      %v745 = vadd.f32 %v632, %v709
      %v746 = vadd.f32 %v633, %v710
      %v747 = vadd.f32 %v634, %v711
      %v748 = vadd.f32 %v635, %v712
      %v749 = vadd.f32 %v636, %v713
      %v750 = vadd.f32 %v637, %v714
      %v751 = vadd.f32 %v638, %v715
      %v752 = vadd.f32 %v639, %v716
      %v753 = vadd.f32 %v640, %v717
      %v754 = vadd.f32 %v641, %v718
      %v755 = vadd.f32 %v642, %v719
      %v756 = vadd.f32 %v643, %v720
      %v757 = vld [vmem:[%s219 + $0x14] sm:$0xff]
      %v758 = vld [vmem:[%s219 + $0x1c] sm:$0xff]
      %v759 = vld [vmem:[%s219 + $0x24] sm:$0xff]
      %v760 = vld [vmem:[%s219 + $0x2c] sm:$0xff]
      %v761 = vld [vmem:[%s219 + $0x34] sm:$0xff]
      %v762 = vld [vmem:[%s219 + $0x3c] sm:$0xff]
      %v763 = vld [vmem:[%s219 + $0x44] sm:$0xff]
      %v764 = vld [vmem:[%s219 + $0x4c] sm:$0xff]
      %v765 = vld [vmem:[%s219 + $0x54] sm:$0xff]
      %v766 = vld [vmem:[%s219 + $0x5c] sm:$0xff]
      %v767 = vld [vmem:[%s219 + $0x64] sm:$0xff]
      %v768 = vld [vmem:[%s219 + $0x6c] sm:$0xff]
      %v769 = vld [vmem:[%s219 + $0x74] sm:$0xff]
      %v770 = vld [vmem:[%s219 + $0x7c] sm:$0xff]
      %v771 = vld [vmem:[%s219 + $0x84] sm:$0xff]
      %v772 = vld [vmem:[%s219 + $0x8c] sm:$0xff]
      %v773 = vld [vmem:[%s219 + $0x94] sm:$0xff]
      %v774 = vld [vmem:[%s219 + $0x9c] sm:$0xff]
      %v775 = vld [vmem:[%s219 + $0xa4] sm:$0xff]
      %v776 = vld [vmem:[%s219 + $0xac] sm:$0xff]
      %v777 = vld [vmem:[%s219 + $0xb4] sm:$0xff]
      %v778 = vld [vmem:[%s219 + $0xbc] sm:$0xff]
      %v779 = vld [vmem:[%s219 + $0xc4] sm:$0xff]
      %v780 = vld [vmem:[%s219 + $0xcc] sm:$0xff]
      %v781 = vld [vmem:[%s219 + $0xd4] sm:$0xff]
      %v782 = vld [vmem:[%s219 + $0xdc] sm:$0xff]
      %v783 = vld [vmem:[%s219 + $0xe4] sm:$0xff]
      %v784 = vld [vmem:[%s219 + $0xec] sm:$0xff]
      %v785 = vld [vmem:[%s219 + $0xf4] sm:$0xff]
      %v786 = vld [vmem:[%s219 + $0xfc] sm:$0xff]
      %v787 = vld [vmem:[%s219 + $0x104] sm:$0xff]
      %v788 = vld [vmem:[%s219 + $0x10c] sm:$0xff]
      %v789 = vld [vmem:[%s219 + $0x114] sm:$0xff]
      %v790 = vld [vmem:[%s219 + $0x11c] sm:$0xff]
      %v791 = vld [vmem:[%s219 + $0x124] sm:$0xff]
      %v792 = vld [vmem:[%s219 + $0x12c] sm:$0x3f]
      %v793 = vld [vmem:[%s1 + $0x5] sm:$0x1]
      %v794 = vlaneseq
      %v795 = vshrl.u32 %v794, 7
      %v796 = vsub.s32 0, %v795
      %v797 = vrot.slane %v793, %v796
      %v798 = vmul.f32 %v757, %v797
      %v799 = vmul.f32 %v758, %v797
      %v800 = vmul.f32 %v759, %v797
      %v801 = vmul.f32 %v760, %v797
      %v802 = vmul.f32 %v761, %v797
      %v803 = vmul.f32 %v762, %v797
      %v804 = vmul.f32 %v763, %v797
      %v805 = vmul.f32 %v764, %v797
      %v806 = vmul.f32 %v765, %v797
      %v807 = vmul.f32 %v766, %v797
      %v808 = vmul.f32 %v767, %v797
      %v809 = vmul.f32 %v768, %v797
      %v810 = vmul.f32 %v769, %v797
      %v811 = vmul.f32 %v770, %v797
      %v812 = vmul.f32 %v771, %v797
      %v813 = vmul.f32 %v772, %v797
      %v814 = vmul.f32 %v773, %v797
      %v815 = vmul.f32 %v774, %v797
      %v816 = vmul.f32 %v775, %v797
      %v817 = vmul.f32 %v776, %v797
      %v818 = vmul.f32 %v777, %v797
      %v819 = vmul.f32 %v778, %v797
      %v820 = vmul.f32 %v779, %v797
      %v821 = vmul.f32 %v780, %v797
      %v822 = vmul.f32 %v781, %v797
      %v823 = vmul.f32 %v782, %v797
      %v824 = vmul.f32 %v783, %v797
      %v825 = vmul.f32 %v784, %v797
      %v826 = vmul.f32 %v785, %v797
      %v827 = vmul.f32 %v786, %v797
      %v828 = vmul.f32 %v787, %v797
      %v829 = vmul.f32 %v788, %v797
      %v830 = vmul.f32 %v789, %v797
      %v831 = vmul.f32 %v790, %v797
      %v832 = vmul.f32 %v791, %v797
      %v833 = vmul.f32 %v792, %v797
      %v834 = vadd.f32 %v721, %v798
      %v835 = vadd.f32 %v722, %v799
      %v836 = vadd.f32 %v723, %v800
      %v837 = vadd.f32 %v724, %v801
      %v838 = vadd.f32 %v725, %v802
      %v839 = vadd.f32 %v726, %v803
      %v840 = vadd.f32 %v727, %v804
      %v841 = vadd.f32 %v728, %v805
      %v842 = vadd.f32 %v729, %v806
      %v843 = vadd.f32 %v730, %v807
      %v844 = vadd.f32 %v731, %v808
      %v845 = vadd.f32 %v732, %v809
      %v846 = vadd.f32 %v733, %v810
      %v847 = vadd.f32 %v734, %v811
      %v848 = vadd.f32 %v735, %v812
      %v849 = vadd.f32 %v736, %v813
      %v850 = vadd.f32 %v737, %v814
      %v851 = vadd.f32 %v738, %v815
      %v852 = vadd.f32 %v739, %v816
      %v853 = vadd.f32 %v740, %v817
      %v854 = vadd.f32 %v741, %v818
      %v855 = vadd.f32 %v742, %v819
      %v856 = vadd.f32 %v743, %v820
      %v857 = vadd.f32 %v744, %v821
      %v858 = vadd.f32 %v745, %v822
      %v859 = vadd.f32 %v746, %v823
      %v860 = vadd.f32 %v747, %v824
      %v861 = vadd.f32 %v748, %v825
      %v862 = vadd.f32 %v749, %v826
      %v863 = vadd.f32 %v750, %v827
      %v864 = vadd.f32 %v751, %v828
      %v865 = vadd.f32 %v752, %v829
      %v866 = vadd.f32 %v753, %v830
      %v867 = vadd.f32 %v754, %v831
      %v868 = vadd.f32 %v755, %v832
      %v869 = vadd.f32 %v756, %v833
      %v870 = vld [vmem:[%s219 + $0x12c] sm:$0xff]
      %v871 = vld [vmem:[%s219 + $0x134] sm:$0xff]
      %v872 = vld [vmem:[%s219 + $0x13c] sm:$0x3f]
      %v873 = vld [vmem:[%s1 + $0x6] sm:$0x1]
      %v874 = vlaneseq
      %v875 = vshrl.u32 %v874, 7
      %v876 = vsub.s32 0, %v875
      %v877 = vrot.slane %v873, %v876
      %v878 = vmul.f32 %v759, %v877
      %v879 = vmul.f32 %v760, %v877
      %v880 = vmul.f32 %v761, %v877
      %v881 = vmul.f32 %v762, %v877
      %v882 = vmul.f32 %v763, %v877
      %v883 = vmul.f32 %v764, %v877
      %v884 = vmul.f32 %v765, %v877
      %v885 = vmul.f32 %v766, %v877
      %v886 = vmul.f32 %v767, %v877
      %v887 = vmul.f32 %v768, %v877
      %v888 = vmul.f32 %v769, %v877
      %v889 = vmul.f32 %v770, %v877
      %v890 = vmul.f32 %v771, %v877
      %v891 = vmul.f32 %v772, %v877
      %v892 = vmul.f32 %v773, %v877
      %v893 = vmul.f32 %v774, %v877
      %v894 = vmul.f32 %v775, %v877
      %v895 = vmul.f32 %v776, %v877
      %v896 = vmul.f32 %v777, %v877
      %v897 = vmul.f32 %v778, %v877
      %v898 = vmul.f32 %v779, %v877
      %v899 = vmul.f32 %v780, %v877
      %v900 = vmul.f32 %v781, %v877
      %v901 = vmul.f32 %v782, %v877
      %v902 = vmul.f32 %v783, %v877
      %v903 = vmul.f32 %v784, %v877
      %v904 = vmul.f32 %v785, %v877
      %v905 = vmul.f32 %v786, %v877
      %v906 = vmul.f32 %v787, %v877
      %v907 = vmul.f32 %v788, %v877
      %v908 = vmul.f32 %v789, %v877
      %v909 = vmul.f32 %v790, %v877
      %v910 = vmul.f32 %v791, %v877
      %v911 = vmul.f32 %v870, %v877
      %v912 = vmul.f32 %v871, %v877
      %v913 = vmul.f32 %v872, %v877
      %v914 = vadd.f32 %v834, %v878
      %v915 = vadd.f32 %v835, %v879
      %v916 = vadd.f32 %v836, %v880
      %v917 = vadd.f32 %v837, %v881
      %v918 = vadd.f32 %v838, %v882
      %v919 = vadd.f32 %v839, %v883
      %v920 = vadd.f32 %v840, %v884
      %v921 = vadd.f32 %v841, %v885
      %v922 = vadd.f32 %v842, %v886
      %v923 = vadd.f32 %v843, %v887
      %v924 = vadd.f32 %v844, %v888
      %v925 = vadd.f32 %v845, %v889
      %v926 = vadd.f32 %v846, %v890
      %v927 = vadd.f32 %v847, %v891
      %v928 = vadd.f32 %v848, %v892
      %v929 = vadd.f32 %v849, %v893
      %v930 = vadd.f32 %v850, %v894
      %v931 = vadd.f32 %v851, %v895
      %v932 = vadd.f32 %v852, %v896
      %v933 = vadd.f32 %v853, %v897
      %v934 = vadd.f32 %v854, %v898
      %v935 = vadd.f32 %v855, %v899
      %v936 = vadd.f32 %v856, %v900
      %v937 = vadd.f32 %v857, %v901
      %v938 = vadd.f32 %v858, %v902
      %v939 = vadd.f32 %v859, %v903
      %v940 = vadd.f32 %v860, %v904
      %v941 = vadd.f32 %v861, %v905
      %v942 = vadd.f32 %v862, %v906
      %v943 = vadd.f32 %v863, %v907
      %v944 = vadd.f32 %v864, %v908
      %v945 = vadd.f32 %v865, %v909
      %v946 = vadd.f32 %v866, %v910
      %v947 = vadd.f32 %v867, %v911
      %v948 = vadd.f32 %v868, %v912
      %v949 = vadd.f32 %v869, %v913
      %v950 = vld [vmem:[%s219 + $0x25] sm:$0xff]
      %v951 = vld [vmem:[%s219 + $0x2d] sm:$0xff]
      %v952 = vld [vmem:[%s219 + $0x35] sm:$0xff]
      %v953 = vld [vmem:[%s219 + $0x3d] sm:$0xff]
      %v954 = vld [vmem:[%s219 + $0x45] sm:$0xff]
      %v955 = vld [vmem:[%s219 + $0x4d] sm:$0xff]
      %v956 = vld [vmem:[%s219 + $0x55] sm:$0xff]
      %v957 = vld [vmem:[%s219 + $0x5d] sm:$0xff]
      %v958 = vld [vmem:[%s219 + $0x65] sm:$0xff]
      %v959 = vld [vmem:[%s219 + $0x6d] sm:$0xff]
      %v960 = vld [vmem:[%s219 + $0x75] sm:$0xff]
      %v961 = vld [vmem:[%s219 + $0x7d] sm:$0xff]
      %v962 = vld [vmem:[%s219 + $0x85] sm:$0xff]
      %v963 = vld [vmem:[%s219 + $0x8d] sm:$0xff]
      %v964 = vld [vmem:[%s219 + $0x95] sm:$0xff]
      %v965 = vld [vmem:[%s219 + $0x9d] sm:$0xff]
      %v966 = vld [vmem:[%s219 + $0xa5] sm:$0xff]
      %v967 = vld [vmem:[%s219 + $0xad] sm:$0xff]
      %v968 = vld [vmem:[%s219 + $0xb5] sm:$0xff]
      %v969 = vld [vmem:[%s219 + $0xbd] sm:$0xff]
      %v970 = vld [vmem:[%s219 + $0xc5] sm:$0xff]
      %v971 = vld [vmem:[%s219 + $0xcd] sm:$0xff]
      %v972 = vld [vmem:[%s219 + $0xd5] sm:$0xff]
      %v973 = vld [vmem:[%s219 + $0xdd] sm:$0xff]
      %v974 = vld [vmem:[%s219 + $0xe5] sm:$0xff]
      %v975 = vld [vmem:[%s219 + $0xed] sm:$0xff]
      %v976 = vld [vmem:[%s219 + $0xf5] sm:$0xff]
      %v977 = vld [vmem:[%s219 + $0xfd] sm:$0xff]
      %v978 = vld [vmem:[%s219 + $0x105] sm:$0xff]
      %v979 = vld [vmem:[%s219 + $0x10d] sm:$0xff]
      %v980 = vld [vmem:[%s219 + $0x115] sm:$0xff]
      %v981 = vld [vmem:[%s219 + $0x11d] sm:$0xff]
      %v982 = vld [vmem:[%s219 + $0x125] sm:$0xff]
      %v983 = vld [vmem:[%s219 + $0x12d] sm:$0xff]
      %v984 = vld [vmem:[%s219 + $0x135] sm:$0xff]
      %v985 = vld [vmem:[%s219 + $0x13d] sm:$0x3f]
      %v986 = vld [vmem:[%s1 + $0x7] sm:$0x1]
      %v987 = vlaneseq
      %v988 = vshrl.u32 %v987, 7
      %v989 = vsub.s32 0, %v988
      %v990 = vrot.slane %v986, %v989
      %v991 = vmul.f32 %v950, %v990
      %v992 = vmul.f32 %v951, %v990
      %v993 = vmul.f32 %v952, %v990
      %v994 = vmul.f32 %v953, %v990
      %v995 = vmul.f32 %v954, %v990
      %v996 = vmul.f32 %v955, %v990
      %v997 = vmul.f32 %v956, %v990
      %v998 = vmul.f32 %v957, %v990
      %v999 = vmul.f32 %v958, %v990
      %v1000 = vmul.f32 %v959, %v990
      %v1001 = vmul.f32 %v960, %v990
      %v1002 = vmul.f32 %v961, %v990
      %v1003 = vmul.f32 %v962, %v990
      %v1004 = vmul.f32 %v963, %v990
      %v1005 = vmul.f32 %v964, %v990
      %v1006 = vmul.f32 %v965, %v990
      %v1007 = vmul.f32 %v966, %v990
      %v1008 = vmul.f32 %v967, %v990
      %v1009 = vmul.f32 %v968, %v990
      %v1010 = vmul.f32 %v969, %v990
      %v1011 = vmul.f32 %v970, %v990
      %v1012 = vmul.f32 %v971, %v990
      %v1013 = vmul.f32 %v972, %v990
      %v1014 = vmul.f32 %v973, %v990
      %v1015 = vmul.f32 %v974, %v990
      %v1016 = vmul.f32 %v975, %v990
      %v1017 = vmul.f32 %v976, %v990
      %v1018 = vmul.f32 %v977, %v990
      %v1019 = vmul.f32 %v978, %v990
      %v1020 = vmul.f32 %v979, %v990
      %v1021 = vmul.f32 %v980, %v990
      %v1022 = vmul.f32 %v981, %v990
      %v1023 = vmul.f32 %v982, %v990
      %v1024 = vmul.f32 %v983, %v990
      %v1025 = vmul.f32 %v984, %v990
      %v1026 = vmul.f32 %v985, %v990
      %v1027 = vadd.f32 %v914, %v991
      %v1028 = vadd.f32 %v915, %v992
      %v1029 = vadd.f32 %v916, %v993
      %v1030 = vadd.f32 %v917, %v994
      %v1031 = vadd.f32 %v918, %v995
      %v1032 = vadd.f32 %v919, %v996
      %v1033 = vadd.f32 %v920, %v997
      %v1034 = vadd.f32 %v921, %v998
      %v1035 = vadd.f32 %v922, %v999
      %v1036 = vadd.f32 %v923, %v1000
      %v1037 = vadd.f32 %v924, %v1001
      %v1038 = vadd.f32 %v925, %v1002
      %v1039 = vadd.f32 %v926, %v1003
      %v1040 = vadd.f32 %v927, %v1004
      %v1041 = vadd.f32 %v928, %v1005
      %v1042 = vadd.f32 %v929, %v1006
      %v1043 = vadd.f32 %v930, %v1007
      %v1044 = vadd.f32 %v931, %v1008
      %v1045 = vadd.f32 %v932, %v1009
      %v1046 = vadd.f32 %v933, %v1010
      %v1047 = vadd.f32 %v934, %v1011
      %v1048 = vadd.f32 %v935, %v1012
      %v1049 = vadd.f32 %v936, %v1013
      %v1050 = vadd.f32 %v937, %v1014
      %v1051 = vadd.f32 %v938, %v1015
      %v1052 = vadd.f32 %v939, %v1016
      %v1053 = vadd.f32 %v940, %v1017
      %v1054 = vadd.f32 %v941, %v1018
      %v1055 = vadd.f32 %v942, %v1019
      %v1056 = vadd.f32 %v943, %v1020
      %v1057 = vadd.f32 %v944, %v1021
      %v1058 = vadd.f32 %v945, %v1022
      %v1059 = vadd.f32 %v946, %v1023
      %v1060 = vadd.f32 %v947, %v1024
      %v1061 = vadd.f32 %v948, %v1025
      %v1062 = vadd.f32 %v949, %v1026
      %v1063 = vld [vmem:[%s219 + $0x26] sm:$0xff]
      %v1064 = vld [vmem:[%s219 + $0x2e] sm:$0xff]
      %v1065 = vld [vmem:[%s219 + $0x36] sm:$0xff]
      %v1066 = vld [vmem:[%s219 + $0x3e] sm:$0xff]
      %v1067 = vld [vmem:[%s219 + $0x46] sm:$0xff]
      %v1068 = vld [vmem:[%s219 + $0x4e] sm:$0xff]
      %v1069 = vld [vmem:[%s219 + $0x56] sm:$0xff]
      %v1070 = vld [vmem:[%s219 + $0x5e] sm:$0xff]
      %v1071 = vld [vmem:[%s219 + $0x66] sm:$0xff]
      %v1072 = vld [vmem:[%s219 + $0x6e] sm:$0xff]
      %v1073 = vld [vmem:[%s219 + $0x76] sm:$0xff]
      %v1074 = vld [vmem:[%s219 + $0x7e] sm:$0xff]
      %v1075 = vld [vmem:[%s219 + $0x86] sm:$0xff]
      %v1076 = vld [vmem:[%s219 + $0x8e] sm:$0xff]
      %v1077 = vld [vmem:[%s219 + $0x96] sm:$0xff]
      %v1078 = vld [vmem:[%s219 + $0x9e] sm:$0xff]
      %v1079 = vld [vmem:[%s219 + $0xa6] sm:$0xff]
      %v1080 = vld [vmem:[%s219 + $0xae] sm:$0xff]
      %v1081 = vld [vmem:[%s219 + $0xb6] sm:$0xff]
      %v1082 = vld [vmem:[%s219 + $0xbe] sm:$0xff]
      %v1083 = vld [vmem:[%s219 + $0xc6] sm:$0xff]
      %v1084 = vld [vmem:[%s219 + $0xce] sm:$0xff]
      %v1085 = vld [vmem:[%s219 + $0xd6] sm:$0xff]
      %v1086 = vld [vmem:[%s219 + $0xde] sm:$0xff]
      %v1087 = vld [vmem:[%s219 + $0xe6] sm:$0xff]
      %v1088 = vld [vmem:[%s219 + $0xee] sm:$0xff]
      %v1089 = vld [vmem:[%s219 + $0xf6] sm:$0xff]
      %v1090 = vld [vmem:[%s219 + $0xfe] sm:$0xff]
      %v1091 = vld [vmem:[%s219 + $0x106] sm:$0xff]
      %v1092 = vld [vmem:[%s219 + $0x10e] sm:$0xff]
      %v1093 = vld [vmem:[%s219 + $0x116] sm:$0xff]
      %v1094 = vld [vmem:[%s219 + $0x11e] sm:$0xff]
      %v1095 = vld [vmem:[%s219 + $0x126] sm:$0xff]
      %v1096 = vld [vmem:[%s219 + $0x12e] sm:$0xff]
      %v1097 = vld [vmem:[%s219 + $0x136] sm:$0xff]
      %v1098 = vld [vmem:[%s219 + $0x13e] sm:$0x3f]
      %v1099 = vld [vmem:[%s1 + $0x8] sm:$0x1]
      %v1100 = vlaneseq
      %v1101 = vshrl.u32 %v1100, 7
      %v1102 = vsub.s32 0, %v1101
      %v1103 = vrot.slane %v1099, %v1102
      %v1104 = vmul.f32 %v1063, %v1103
      %v1105 = vmul.f32 %v1064, %v1103
      %v1106 = vmul.f32 %v1065, %v1103
      %v1107 = vmul.f32 %v1066, %v1103
      %v1108 = vmul.f32 %v1067, %v1103
      %v1109 = vmul.f32 %v1068, %v1103
      %v1110 = vmul.f32 %v1069, %v1103
      %v1111 = vmul.f32 %v1070, %v1103
      %v1112 = vmul.f32 %v1071, %v1103
      %v1113 = vmul.f32 %v1072, %v1103
      %v1114 = vmul.f32 %v1073, %v1103
      %v1115 = vmul.f32 %v1074, %v1103
      %v1116 = vmul.f32 %v1075, %v1103
      %v1117 = vmul.f32 %v1076, %v1103
      %v1118 = vmul.f32 %v1077, %v1103
      %v1119 = vmul.f32 %v1078, %v1103
      %v1120 = vmul.f32 %v1079, %v1103
      %v1121 = vmul.f32 %v1080, %v1103
      %v1122 = vmul.f32 %v1081, %v1103
      %v1123 = vmul.f32 %v1082, %v1103
      %v1124 = vmul.f32 %v1083, %v1103
      %v1125 = vmul.f32 %v1084, %v1103
      %v1126 = vmul.f32 %v1085, %v1103
      %v1127 = vmul.f32 %v1086, %v1103
      %v1128 = vmul.f32 %v1087, %v1103
      %v1129 = vmul.f32 %v1088, %v1103
      %v1130 = vmul.f32 %v1089, %v1103
      %v1131 = vmul.f32 %v1090, %v1103
      %v1132 = vmul.f32 %v1091, %v1103
      %v1133 = vmul.f32 %v1092, %v1103
      %v1134 = vmul.f32 %v1093, %v1103
      %v1135 = vmul.f32 %v1094, %v1103
      %v1136 = vmul.f32 %v1095, %v1103
      %v1137 = vmul.f32 %v1096, %v1103
      %v1138 = vmul.f32 %v1097, %v1103
      %v1139 = vmul.f32 %v1098, %v1103
      %v1140 = vadd.f32 %v1027, %v1104
      %v1141 = vadd.f32 %v1028, %v1105
      %v1142 = vadd.f32 %v1029, %v1106
      %v1143 = vadd.f32 %v1030, %v1107
      %v1144 = vadd.f32 %v1031, %v1108
      %v1145 = vadd.f32 %v1032, %v1109
      %v1146 = vadd.f32 %v1033, %v1110
      %v1147 = vadd.f32 %v1034, %v1111
      %v1148 = vadd.f32 %v1035, %v1112
      %v1149 = vadd.f32 %v1036, %v1113
      %v1150 = vadd.f32 %v1037, %v1114
      %v1151 = vadd.f32 %v1038, %v1115
      %v1152 = vadd.f32 %v1039, %v1116
      %v1153 = vadd.f32 %v1040, %v1117
      %v1154 = vadd.f32 %v1041, %v1118
      %v1155 = vadd.f32 %v1042, %v1119
      %v1156 = vadd.f32 %v1043, %v1120
      %v1157 = vadd.f32 %v1044, %v1121
      %v1158 = vadd.f32 %v1045, %v1122
      %v1159 = vadd.f32 %v1046, %v1123
      %v1160 = vadd.f32 %v1047, %v1124
      %v1161 = vadd.f32 %v1048, %v1125
      %v1162 = vadd.f32 %v1049, %v1126
      %v1163 = vadd.f32 %v1050, %v1127
      %v1164 = vadd.f32 %v1051, %v1128
      %v1165 = vadd.f32 %v1052, %v1129
      %v1166 = vadd.f32 %v1053, %v1130
      %v1167 = vadd.f32 %v1054, %v1131
      %v1168 = vadd.f32 %v1055, %v1132
      %v1169 = vadd.f32 %v1056, %v1133
      %v1170 = vadd.f32 %v1057, %v1134
      %v1171 = vadd.f32 %v1058, %v1135
      %v1172 = vadd.f32 %v1059, %v1136
      %v1173 = vadd.f32 %v1060, %v1137
      %v1174 = vadd.f32 %v1061, %v1138
      %v1175 = vadd.f32 %v1062, %v1139
      %v1176 = vld [vmem:[%s2] sm:$0x1]
      %v1178 = vlaneseq
      %v1179 = vshrl.u32 %v1178, 7
      %v1180 = vsub.s32 0, %v1179
      %v1181 = vrot.slane %v1176, %v1180
      %v1183 = vadd.f32 %v1140, %v1181
      %v1184 = vadd.f32 %v1141, %v1181
      %v1185 = vadd.f32 %v1142, %v1181
      %v1186 = vadd.f32 %v1143, %v1181
      %v1187 = vadd.f32 %v1144, %v1181
      %v1188 = vadd.f32 %v1145, %v1181
      %v1189 = vadd.f32 %v1146, %v1181
      %v1190 = vadd.f32 %v1147, %v1181
      %v1191 = vadd.f32 %v1148, %v1181
      %v1192 = vadd.f32 %v1149, %v1181
      %v1193 = vadd.f32 %v1150, %v1181
      %v1194 = vadd.f32 %v1151, %v1181
      %v1195 = vadd.f32 %v1152, %v1181
      %v1196 = vadd.f32 %v1153, %v1181
      %v1197 = vadd.f32 %v1154, %v1181
      %v1198 = vadd.f32 %v1155, %v1181
      %v1199 = vadd.f32 %v1156, %v1181
      %v1200 = vadd.f32 %v1157, %v1181
      %v1201 = vadd.f32 %v1158, %v1181
      %v1202 = vadd.f32 %v1159, %v1181
      %v1203 = vadd.f32 %v1160, %v1181
      %v1204 = vadd.f32 %v1161, %v1181
      %v1205 = vadd.f32 %v1162, %v1181
      %v1206 = vadd.f32 %v1163, %v1181
      %v1207 = vadd.f32 %v1164, %v1181
      %v1208 = vadd.f32 %v1165, %v1181
      %v1209 = vadd.f32 %v1166, %v1181
      %v1210 = vadd.f32 %v1167, %v1181
      %v1211 = vadd.f32 %v1168, %v1181
      %v1212 = vadd.f32 %v1169, %v1181
      %v1213 = vadd.f32 %v1170, %v1181
      %v1214 = vadd.f32 %v1171, %v1181
      %v1215 = vadd.f32 %v1172, %v1181
      %v1216 = vadd.f32 %v1173, %v1181
      %v1217 = vadd.f32 %v1174, %v1181
      %v1218 = vadd.f32 %v1175, %v1181
      %v1219 = vld [vmem:[%s3] sm:$0xf]
      %v1220 = vld [vmem:[%s4] sm:$0x1]
      %v1222 = vlaneseq
      %v1223 = vshrl.u32 %v1222, 7
      %v1224 = vsub.s32 0, %v1223
      %v1225 = vrot.slane %v1220, %v1224
      %vm1227 = vcmask 31744
      %v1229 = vsel %vm1227, %v1183, 0
      %v1232 = vsel %vm1227, %v1184, 0
      %v1235 = vsel %vm1227, %v1185, 0
      %v1238 = vsel %vm1227, %v1186, 0
      %v1241 = vsel %vm1227, %v1187, 0
      %v1244 = vsel %vm1227, %v1188, 0
      %v1247 = vsel %vm1227, %v1189, 0
      %v1250 = vsel %vm1227, %v1190, 0
      %v1253 = vsel %vm1227, %v1191, 0
      %v1256 = vsel %vm1227, %v1192, 0
      %v1259 = vsel %vm1227, %v1193, 0
      %v1262 = vsel %vm1227, %v1194, 0
      %v1265 = vsel %vm1227, %v1195, 0
      %v1268 = vsel %vm1227, %v1196, 0
      %v1271 = vsel %vm1227, %v1197, 0
      %v1274 = vsel %vm1227, %v1198, 0
      %v1277 = vsel %vm1227, %v1199, 0
      %v1280 = vsel %vm1227, %v1200, 0
      %v1283 = vsel %vm1227, %v1201, 0
      %v1286 = vsel %vm1227, %v1202, 0
      %v1289 = vsel %vm1227, %v1203, 0
      %v1292 = vsel %vm1227, %v1204, 0
      %v1295 = vsel %vm1227, %v1205, 0
      %v1298 = vsel %vm1227, %v1206, 0
      %v1301 = vsel %vm1227, %v1207, 0
      %v1304 = vsel %vm1227, %v1208, 0
      %v1307 = vsel %vm1227, %v1209, 0
      %v1310 = vsel %vm1227, %v1210, 0
      %v1313 = vsel %vm1227, %v1211, 0
      %v1316 = vsel %vm1227, %v1212, 0
      %v1319 = vsel %vm1227, %v1213, 0
      %v1322 = vsel %vm1227, %v1214, 0
      %v1325 = vsel %vm1227, %v1215, 0
      %v1328 = vsel %vm1227, %v1216, 0
      %v1331 = vsel %vm1227, %v1217, 0
      %v1334 = vsel %vm1227, %v1218, 0
      %vm1336 = vcmask 1043456
      %v1338 = vsel %vm1336, %v1219, 0
      %1340 = vmatprep.subr.mxu0 0.0
      %1341 = vmatpush1.msra.mxu0 %v1338
      %1342 = vmatprep.subr.mxu0 0.0
      %1343 = vmatpush1.msra.mxu0 0.0
      %1344 = vmatprep.subr.mxu0 0.0
      %1345 = vmatpush1.msra.mxu0 0.0
      %1346 = vmatprep.subr.mxu0 0.0
      %1347 = vmatpush1.msra.mxu0 0.0
      %1348 = vmatprep.subr.mxu0 0.0
      %1349 = vmatpush1.msra.mxu0 0.0
      %1350 = vmatprep.subr.mxu0 0.0
      %1351 = vmatpush1.msra.mxu0 0.0
      %1352 = vmatprep.subr.mxu0 0.0
      %1353 = vmatpush1.msra.mxu0 0.0
      %1354 = vmatprep.subr.mxu0 0.0
      %1355 = vmatpush1.msra.mxu0 0.0
      %1356 = vmatprep.subr.mxu0 0.0
      %1357 = vmatpush1.msra.mxu0 0.0
      %1358 = vmatprep.subr.mxu0 0.0
      %1359 = vmatpush1.msra.mxu0 0.0
      %1360 = vmatprep.subr.mxu0 0.0
      %1361 = vmatpush1.msra.mxu0 0.0
      %1362 = vmatprep.subr.mxu0 0.0
      %1363 = vmatpush1.msra.mxu0 0.0
      %1364 = vmatprep.subr.mxu0 0.0
      %1365 = vmatpush1.msra.mxu0 0.0
      %1366 = vmatprep.subr.mxu0 0.0
      %1367 = vmatpush1.msra.mxu0 0.0
      %1368 = vmatprep.subr.mxu0 0.0
      %1369 = vmatpush1.msra.mxu0 0.0
      %1370 = vmatprep.subr.mxu0 0.0
      %1371 = vmatpush1.msra.mxu0 0.0
      %1372 = vmatprep.subr.mxu0 0.0
      %1373 = vmatpush1.msra.mxu0 0.0
      %1374 = vmatprep.subr.mxu0 0.0
      %1375 = vmatpush1.msra.mxu0 0.0
      %1376 = vmatprep.subr.mxu0 0.0
      %1377 = vmatpush1.msra.mxu0 0.0
      %1378 = vmatprep.subr.mxu0 0.0
      %1379 = vmatpush1.msra.mxu0 0.0
      %1380 = vmatprep.subr.mxu0 0.0
      %1381 = vmatpush1.msra.mxu0 0.0
      %1382 = vmatprep.subr.mxu0 0.0
      %1383 = vmatpush1.msra.mxu0 0.0
      %1384 = vmatprep.subr.mxu0 0.0
      %1385 = vmatpush1.msra.mxu0 0.0
      %1386 = vmatprep.subr.mxu0 0.0
      %1387 = vmatpush1.msra.mxu0 0.0
      %1388 = vmatprep.subr.mxu0 0.0
      %1389 = vmatpush1.msra.mxu0 0.0
      %1390 = vmatprep.subr.mxu0 0.0
      %1391 = vmatpush1.msra.mxu0 0.0
      %1392 = vmatprep.subr.mxu0 0.0
      %1393 = vmatpush1.msra.mxu0 0.0
      %1394 = vmatprep.subr.mxu0 0.0
      %1395 = vmatpush1.msra.mxu0 0.0
      %1396 = vmatprep.subr.mxu0 0.0
      %1397 = vmatpush1.msra.mxu0 0.0
      %1398 = vmatprep.subr.mxu0 0.0
      %1399 = vmatpush1.msra.mxu0 0.0
      %1400 = vmatprep.subr.mxu0 0.0
      %1401 = vmatpush1.msra.mxu0 0.0
      %1402 = vmatprep.subr.mxu0 0.0
      %1403 = vmatpush1.msra.mxu0 0.0
      %1404 = vmatprep.mubr.f32.mxu0 0.0
      %1405 = vmatmul.mubr.f32.gmra.mrb[0].mxu0 %v1229
      %v1406 = vpop.f32.mrb[0].mxu0
      %v1407 = vadd.f32 %v1225, %v1406
      %v1408 = vpop.f32.mrb[0].mxu0
      %1409 = vmatprep.mubr.f32.mxu0 0.0
      %1410 = vmatmul.mubr.f32.gmra.mrb[0].mxu0 %v1232
      %v1411 = vpop.f32.mrb[0].mxu0
      %v1412 = vadd.f32 %v1225, %v1411
      %v1413 = vpop.f32.mrb[0].mxu0
      %1414 = vmatprep.mubr.f32.mxu0 0.0
      %1415 = vmatmul.mubr.f32.gmra.mrb[0].mxu0 %v1235
      %v1416 = vpop.f32.mrb[0].mxu0
      %v1417 = vadd.f32 %v1225, %v1416
      %v1418 = vpop.f32.mrb[0].mxu0
      %1419 = vmatprep.mubr.f32.mxu0 0.0
      %1420 = vmatmul.mubr.f32.gmra.mrb[0].mxu0 %v1238
      %v1421 = vpop.f32.mrb[0].mxu0
      %v1422 = vadd.f32 %v1225, %v1421
      %v1423 = vpop.f32.mrb[0].mxu0
      %1424 = vmatprep.mubr.f32.mxu0 0.0
      %1425 = vmatmul.mubr.f32.gmra.mrb[0].mxu0 %v1241
      %v1426 = vpop.f32.mrb[0].mxu0
      %v1427 = vadd.f32 %v1225, %v1426
      %v1428 = vpop.f32.mrb[0].mxu0
      %1429 = vmatprep.mubr.f32.mxu0 0.0
      %1430 = vmatmul.mubr.f32.gmra.mrb[0].mxu0 %v1244
      %v1431 = vpop.f32.mrb[0].mxu0
      %v1432 = vadd.f32 %v1225, %v1431
      %v1433 = vpop.f32.mrb[0].mxu0
      %1434 = vmatprep.mubr.f32.mxu0 0.0
      %1435 = vmatmul.mubr.f32.gmra.mrb[0].mxu0 %v1247
      %v1436 = vpop.f32.mrb[0].mxu0
      %v1437 = vadd.f32 %v1225, %v1436
      %v1438 = vpop.f32.mrb[0].mxu0
      %1439 = vmatprep.mubr.f32.mxu0 0.0
      %1440 = vmatmul.mubr.f32.gmra.mrb[0].mxu0 %v1250
      %v1441 = vpop.f32.mrb[0].mxu0
      %v1442 = vadd.f32 %v1225, %v1441
      %v1443 = vpop.f32.mrb[0].mxu0
      %1444 = vmatprep.mubr.f32.mxu0 0.0
      %1445 = vmatmul.mubr.f32.gmra.mrb[0].mxu0 %v1253
      %v1446 = vpop.f32.mrb[0].mxu0
      %v1447 = vadd.f32 %v1225, %v1446
      %v1448 = vpop.f32.mrb[0].mxu0
      %1449 = vmatprep.mubr.f32.mxu0 0.0
      %1450 = vmatmul.mubr.f32.gmra.mrb[0].mxu0 %v1256
      %v1451 = vpop.f32.mrb[0].mxu0
      %v1452 = vadd.f32 %v1225, %v1451
      %v1453 = vpop.f32.mrb[0].mxu0
      %1454 = vmatprep.mubr.f32.mxu0 0.0
      %1455 = vmatmul.mubr.f32.gmra.mrb[0].mxu0 %v1259
      %v1456 = vpop.f32.mrb[0].mxu0
      %v1457 = vadd.f32 %v1225, %v1456
      %v1458 = vpop.f32.mrb[0].mxu0
      %1459 = vmatprep.mubr.f32.mxu0 0.0
      %1460 = vmatmul.mubr.f32.gmra.mrb[0].mxu0 %v1262
      %v1461 = vpop.f32.mrb[0].mxu0
      %v1462 = vadd.f32 %v1225, %v1461
      %v1463 = vpop.f32.mrb[0].mxu0
      %1464 = vmatprep.mubr.f32.mxu0 0.0
      %1465 = vmatmul.mubr.f32.gmra.mrb[0].mxu0 %v1265
      %v1466 = vpop.f32.mrb[0].mxu0
      %v1467 = vadd.f32 %v1225, %v1466
      %v1468 = vpop.f32.mrb[0].mxu0
      %1469 = vmatprep.mubr.f32.mxu0 0.0
      %1470 = vmatmul.mubr.f32.gmra.mrb[0].mxu0 %v1268
      %v1471 = vpop.f32.mrb[0].mxu0
      %v1472 = vadd.f32 %v1225, %v1471
      %v1473 = vpop.f32.mrb[0].mxu0
      %1474 = vmatprep.mubr.f32.mxu0 0.0
      %1475 = vmatmul.mubr.f32.gmra.mrb[0].mxu0 %v1271
      %v1476 = vpop.f32.mrb[0].mxu0
      %v1477 = vadd.f32 %v1225, %v1476
      %v1478 = vpop.f32.mrb[0].mxu0
      %1479 = vmatprep.mubr.f32.mxu0 0.0
      %1480 = vmatmul.mubr.f32.gmra.mrb[0].mxu0 %v1274
      %v1481 = vpop.f32.mrb[0].mxu0
      %v1482 = vadd.f32 %v1225, %v1481
      %v1483 = vpop.f32.mrb[0].mxu0
      %1484 = vmatprep.mubr.f32.mxu0 0.0
      %1485 = vmatmul.mubr.f32.gmra.mrb[0].mxu0 %v1277
      %v1486 = vpop.f32.mrb[0].mxu0
      %v1487 = vadd.f32 %v1225, %v1486
      %v1488 = vpop.f32.mrb[0].mxu0
      %1489 = vmatprep.mubr.f32.mxu0 0.0
      %1490 = vmatmul.mubr.f32.gmra.mrb[0].mxu0 %v1280
      %v1491 = vpop.f32.mrb[0].mxu0
      %v1492 = vadd.f32 %v1225, %v1491
      %v1493 = vpop.f32.mrb[0].mxu0
      %1494 = vmatprep.mubr.f32.mxu0 0.0
      %1495 = vmatmul.mubr.f32.gmra.mrb[0].mxu0 %v1283
      %v1496 = vpop.f32.mrb[0].mxu0
      %v1497 = vadd.f32 %v1225, %v1496
      %v1498 = vpop.f32.mrb[0].mxu0
      %1499 = vmatprep.mubr.f32.mxu0 0.0
      %1500 = vmatmul.mubr.f32.gmra.mrb[0].mxu0 %v1286
      %v1501 = vpop.f32.mrb[0].mxu0
      %v1502 = vadd.f32 %v1225, %v1501
      %v1503 = vpop.f32.mrb[0].mxu0
      %1504 = vmatprep.mubr.f32.mxu0 0.0
      %1505 = vmatmul.mubr.f32.gmra.mrb[0].mxu0 %v1289
      %v1506 = vpop.f32.mrb[0].mxu0
      %v1507 = vadd.f32 %v1225, %v1506
      %v1508 = vpop.f32.mrb[0].mxu0
      %1509 = vmatprep.mubr.f32.mxu0 0.0
      %1510 = vmatmul.mubr.f32.gmra.mrb[0].mxu0 %v1292
      %v1511 = vpop.f32.mrb[0].mxu0
      %v1512 = vadd.f32 %v1225, %v1511
      %v1513 = vpop.f32.mrb[0].mxu0
      %1514 = vmatprep.mubr.f32.mxu0 0.0
      %1515 = vmatmul.mubr.f32.gmra.mrb[0].mxu0 %v1295
      %v1516 = vpop.f32.mrb[0].mxu0
      %v1517 = vadd.f32 %v1225, %v1516
      %v1518 = vpop.f32.mrb[0].mxu0
      %1519 = vmatprep.mubr.f32.mxu0 0.0
      %1520 = vmatmul.mubr.f32.gmra.mrb[0].mxu0 %v1298
      %v1521 = vpop.f32.mrb[0].mxu0
      %v1522 = vadd.f32 %v1225, %v1521
      %v1523 = vpop.f32.mrb[0].mxu0
      %1524 = vmatprep.mubr.f32.mxu0 0.0
      %1525 = vmatmul.mubr.f32.gmra.mrb[0].mxu0 %v1301
      %v1526 = vpop.f32.mrb[0].mxu0
      %v1527 = vadd.f32 %v1225, %v1526
      %v1528 = vpop.f32.mrb[0].mxu0
      %1529 = vmatprep.mubr.f32.mxu0 0.0
      %1530 = vmatmul.mubr.f32.gmra.mrb[0].mxu0 %v1304
      %v1531 = vpop.f32.mrb[0].mxu0
      %v1532 = vadd.f32 %v1225, %v1531
      %v1533 = vpop.f32.mrb[0].mxu0
      %1534 = vmatprep.mubr.f32.mxu0 0.0
      %1535 = vmatmul.mubr.f32.gmra.mrb[0].mxu0 %v1307
      %v1536 = vpop.f32.mrb[0].mxu0
      %v1537 = vadd.f32 %v1225, %v1536
      %v1538 = vpop.f32.mrb[0].mxu0
      %1539 = vmatprep.mubr.f32.mxu0 0.0
      %1540 = vmatmul.mubr.f32.gmra.mrb[0].mxu0 %v1310
      %v1541 = vpop.f32.mrb[0].mxu0
      %v1542 = vadd.f32 %v1225, %v1541
      %v1543 = vpop.f32.mrb[0].mxu0
      %1544 = vmatprep.mubr.f32.mxu0 0.0
      %1545 = vmatmul.mubr.f32.gmra.mrb[0].mxu0 %v1313
      %v1546 = vpop.f32.mrb[0].mxu0
      %v1547 = vadd.f32 %v1225, %v1546
      %v1548 = vpop.f32.mrb[0].mxu0
      %1549 = vmatprep.mubr.f32.mxu0 0.0
      %1550 = vmatmul.mubr.f32.gmra.mrb[0].mxu0 %v1316
      %v1551 = vpop.f32.mrb[0].mxu0
      %v1552 = vadd.f32 %v1225, %v1551
      %v1553 = vpop.f32.mrb[0].mxu0
      %1554 = vmatprep.mubr.f32.mxu0 0.0
      %1555 = vmatmul.mubr.f32.gmra.mrb[0].mxu0 %v1319
      %v1556 = vpop.f32.mrb[0].mxu0
      %v1557 = vadd.f32 %v1225, %v1556
      %v1558 = vpop.f32.mrb[0].mxu0
      %1559 = vmatprep.mubr.f32.mxu0 0.0
      %1560 = vmatmul.mubr.f32.gmra.mrb[0].mxu0 %v1322
      %v1561 = vpop.f32.mrb[0].mxu0
      %v1562 = vadd.f32 %v1225, %v1561
      %v1563 = vpop.f32.mrb[0].mxu0
      %1564 = vmatprep.mubr.f32.mxu0 0.0
      %1565 = vmatmul.mubr.f32.gmra.mrb[0].mxu0 %v1325
      %v1566 = vpop.f32.mrb[0].mxu0
      %v1567 = vadd.f32 %v1225, %v1566
      %v1568 = vpop.f32.mrb[0].mxu0
      %1569 = vmatprep.mubr.f32.mxu0 0.0
      %1570 = vmatmul.mubr.f32.gmra.mrb[0].mxu0 %v1328
      %v1571 = vpop.f32.mrb[0].mxu0
      %v1572 = vadd.f32 %v1225, %v1571
      %v1573 = vpop.f32.mrb[0].mxu0
      %1574 = vmatprep.mubr.f32.mxu0 0.0
      %1575 = vmatmul.mubr.f32.gmra.mrb[0].mxu0 %v1331
      %v1576 = vpop.f32.mrb[0].mxu0
      %v1577 = vadd.f32 %v1225, %v1576
      %v1578 = vpop.f32.mrb[0].mxu0
      %1579 = vmatprep.mubr.f32.mxu0 0.0
      %1580 = vmatmul.mubr.f32.gmra.mrb[0].mxu0 %v1334
      %v1581 = vpop.f32.mrb[0].mxu0
      %v1582 = vadd.f32 %v1225, %v1581
      %v1583 = vpop.f32.mrb[0].mxu0
      %1584 = vdwg.mxu0
      %vm1585 = vcmask 64512
      %1586 = vst.msk [vmem:[%s224] sm:$0xff] %vm1585, %v1407
      %1587 = vst.msk [vmem:[%s224 + $0x8] sm:$0xff] %vm1585, %v1412
      %1588 = vst.msk [vmem:[%s224 + $0x10] sm:$0xff] %vm1585, %v1417
      %1589 = vst.msk [vmem:[%s224 + $0x18] sm:$0xff] %vm1585, %v1422
      %1590 = vst.msk [vmem:[%s224 + $0x20] sm:$0xff] %vm1585, %v1427
      %1591 = vst.msk [vmem:[%s224 + $0x28] sm:$0xff] %vm1585, %v1432
      %1592 = vst.msk [vmem:[%s224 + $0x30] sm:$0xff] %vm1585, %v1437
      %1593 = vst.msk [vmem:[%s224 + $0x38] sm:$0xff] %vm1585, %v1442
      %1594 = vst.msk [vmem:[%s224 + $0x40] sm:$0xff] %vm1585, %v1447
      %1595 = vst.msk [vmem:[%s224 + $0x48] sm:$0xff] %vm1585, %v1452
      %1596 = vst.msk [vmem:[%s224 + $0x50] sm:$0xff] %vm1585, %v1457
      %1597 = vst.msk [vmem:[%s224 + $0x58] sm:$0xff] %vm1585, %v1462
      %1598 = vst.msk [vmem:[%s224 + $0x60] sm:$0xff] %vm1585, %v1467
      %1599 = vst.msk [vmem:[%s224 + $0x68] sm:$0xff] %vm1585, %v1472
      %1600 = vst.msk [vmem:[%s224 + $0x70] sm:$0xff] %vm1585, %v1477
      %1601 = vst.msk [vmem:[%s224 + $0x78] sm:$0xff] %vm1585, %v1482
      %1602 = vst.msk [vmem:[%s224 + $0x80] sm:$0xff] %vm1585, %v1487
      %1603 = vst.msk [vmem:[%s224 + $0x88] sm:$0xff] %vm1585, %v1492
      %1604 = vst.msk [vmem:[%s224 + $0x90] sm:$0xff] %vm1585, %v1497
      %1605 = vst.msk [vmem:[%s224 + $0x98] sm:$0xff] %vm1585, %v1502
      %1606 = vst.msk [vmem:[%s224 + $0xa0] sm:$0xff] %vm1585, %v1507
      %1607 = vst.msk [vmem:[%s224 + $0xa8] sm:$0xff] %vm1585, %v1512
      %1608 = vst.msk [vmem:[%s224 + $0xb0] sm:$0xff] %vm1585, %v1517
      %1609 = vst.msk [vmem:[%s224 + $0xb8] sm:$0xff] %vm1585, %v1522
      %1610 = vst.msk [vmem:[%s224 + $0xc0] sm:$0xff] %vm1585, %v1527
      %1611 = vst.msk [vmem:[%s224 + $0xc8] sm:$0xff] %vm1585, %v1532
      %1612 = vst.msk [vmem:[%s224 + $0xd0] sm:$0xff] %vm1585, %v1537
      %1613 = vst.msk [vmem:[%s224 + $0xd8] sm:$0xff] %vm1585, %v1542
      %1614 = vst.msk [vmem:[%s224 + $0xe0] sm:$0xff] %vm1585, %v1547
      %1615 = vst.msk [vmem:[%s224 + $0xe8] sm:$0xff] %vm1585, %v1552
      %1616 = vst.msk [vmem:[%s224 + $0xf0] sm:$0xff] %vm1585, %v1557
      %1617 = vst.msk [vmem:[%s224 + $0xf8] sm:$0xff] %vm1585, %v1562
      %1618 = vst.msk [vmem:[%s224 + $0x100] sm:$0xff] %vm1585, %v1567
      %1619 = vst.msk [vmem:[%s224 + $0x108] sm:$0xff] %vm1585, %v1572
      %1620 = vst.msk [vmem:[%s224 + $0x110] sm:$0xff] %vm1585, %v1577
      %vm1621 = vcmask 62464
      %1622 = vst.msk [vmem:[%s224 + $0x118] sm:$0x3f] %vm1621, %v1582
      %p1623 = scmp.lt.s32.totalorder %s16, 1
      %s1624 = scalar_select %p1623, %s16, 1
      %s1625 = smul.addr %s1624, 36
      %s1626 = smul.addr %s1625, 8
      %s1627 = scalar_lea.vmem %s5, %s1626
      // Predicated region
      $region41: #{tpu_custom_call.1} parent=39 // pred_check
        %p1628 = pneg %p144
      $region42: #{tpu_custom_call.1} parent=39 // pred_check_branch
        %1630 = sbr.rel (%p1628) target = $region44
      $region43: #{tpu_custom_call.1} parent=39 // pred_region
        _
      $region44: #{tpu_custom_call.1} parent=39 // pred_fallthru
        _
    $region40: #{tpu_custom_call.1} parent=5 // pred_fallthru
      _
    %p1631 = scmp.le.s32.totalorder 2, %s11
    // Predicated region
    $region45: #{tpu_custom_call.1} parent=5 // pred_check
      %p1632 = pneg %p1631
    $region46: #{tpu_custom_call.1} parent=5 // pred_check_branch
      %1634 = sbr.rel (%p1632) target = $region48
    $region47: #{tpu_custom_call.1} parent=5 // pred_region
      %s1635 = ssub.s32 %s11, 2
      // Predicated region
      $region49: #{tpu_custom_call.1} parent=47 // pred_check
        %p1636 = pneg %p150
      $region50: #{tpu_custom_call.1} parent=47 // pred_check_branch
        %1638 = sbr.rel (%p1636) target = $region52
      $region51: #{tpu_custom_call.1} parent=47 // pred_region
        %p1639 = scmp.lt.s32.totalorder %s17, 1
        %s1640 = scalar_select %p1639, %s17, 1
        %s1641 = smul.addr %s1640, 36
        %s1642 = smul.addr %s1641, 8
        %s1643 = scalar_lea.vmem %s5, %s1642
      $region52: #{tpu_custom_call.1} parent=47 // pred_fallthru
        _
    $region48: #{tpu_custom_call.1} parent=5 // pred_fallthru
      _
  $region6: #{tpu_custom_call.1} parent=0 // loop_footer
    %s15 = sadd.s32 1, %s11
  $region7: #{tpu_custom_call.1} parent=0 // loop_footer_branch
    %10 = sbr.rel target = $region3
  $region8: #{tpu_custom_call.1} parent=0 // loop_exit
    _

</llo_original>
